<compile_context>
chip_gen: v6e
topology: v6e:2x2x1
jax: 0.10.0
libtpu: 0.0.40
codegen_flags: <defaults>
</compile_context>

<pallas_src>
import jax
import jax.numpy as jnp
from jax.experimental import pallas as pl
from jax.experimental.pallas import tpu as pltpu

EPS = 1e-5     # PyG GraphNorm default eps
# Padded channel width. 128 fills a v5e MXU exactly; on v6e/v7x (256-wide MXU)
# bump to 256 only if hidden_channels ever exceeds 128 -- at hidden=32 the
# kernel is latency/DMA bound and extra channel padding would just waste FLOPs.
CPAD = 128
GPAD = 8       # padded number of graphs (fp32 sublane multiple)
NPAD_MULT = 128  # node-dim padding multiple (lane-dense last dim for A_hat/m_mean)


def _vmem_limit_bytes():
    """Generation-aware VMEM limit: ~75% of physical capacity (v5e/v6e 128MiB,
    v7x 64MiB), with a conservative fallback if the query is unavailable."""
    try:
        cap = int(pltpu.get_tpu_info().vmem_capacity_bytes)
    except Exception:
        cap = 64 * 1024 * 1024
    return max(32 * 1024 * 1024, (cap * 3) // 4)


# ---------------------------------------------------------------------------
# Fused Pallas kernel: one grid step per GCN layer; X resident in VMEM scratch
# ---------------------------------------------------------------------------
def gcn_layer_kernel(a_ref, x0_ref, mmean_ref, mt_ref,
                     w_ref, b_ref, alpha_ref, gamma_ref, beta_ref,
                     lw_ref, lb_ref, o_ref, x_scr):
    l = pl.program_id(0)
    num_layers = pl.num_programs(0)

    @pl.when(l == 0)
    def _():
        x_scr[...] = x0_ref[...]                       # seed resident activation

    x = x_scr[...]                                     # [N, C]  bf16
    a = a_ref[...]                                     # [N, N]  bf16 (A_hat)
    m_mean = mmean_ref[...]                            # [Gp, N] fp32 (rows sum to 1)
    m_t = mt_ref[...]                                  # [N, Gp] bf16 (0/1 membership)

    # ---- GCNConv: H = A_hat @ (X @ W_l) + b_l  (bf16 MXU, fp32 accumulate) ----
    xw = jnp.dot(x, w_ref[0], preferred_element_type=jnp.float32)        # [N, C]
    h = jnp.dot(a, xw.astype(jnp.bfloat16),
                preferred_element_type=jnp.float32) + b_ref[0]           # [N, C] fp32

    alpha = alpha_ref[0]                                                 # [1, C]
    gamma = gamma_ref[0]
    beta = beta_ref[0]

    # ---- GraphNorm (two-pass variance, per-graph affine, per-graph rsqrt) ----
    mean_g = jnp.dot(m_mean, h, preferred_element_type=jnp.float32)      # [Gp, C]
    mean_n = jnp.dot(m_t, mean_g.astype(jnp.bfloat16),
                     preferred_element_type=jnp.float32)                 # [N, C]
    hc = h - alpha * mean_n                                              # [N, C]
    var_g = jnp.dot(m_mean, hc * hc,
                    preferred_element_type=jnp.float32)                  # [Gp, C]
    scale_g = gamma * jax.lax.rsqrt(var_g + EPS)                         # [Gp, C]
    scale_n = jnp.dot(m_t, scale_g.astype(jnp.bfloat16),
                      preferred_element_type=jnp.float32)                # [N, C]
    y = scale_n * hc + beta                                              # one FMA/elem

    # ---- ReLU (dropout is identity in eval mode) ----
    # TODO(synk): F.dropout with training=True would need in-kernel PRNG.
    x_new = jnp.maximum(y, 0.0).astype(jnp.bfloat16)
    x_scr[...] = x_new

    # ---- Readout on the last layer: global_mean_pool + Linear ----
    @pl.when(l == num_layers - 1)
    def _():
        pooled = jnp.dot(m_mean.astype(jnp.bfloat16), x_new,
                         preferred_element_type=jnp.float32)             # [Gp, C]
        o_ref[...] = (jnp.dot(pooled.astype(jnp.bfloat16), lw_ref[...],
                              preferred_element_type=jnp.float32) + lb_ref[...])


# ---------------------------------------------------------------------------
# pallas_call wrapper
# ---------------------------------------------------------------------------
@jax.jit
def gcn_forward_fused(a_hat, x0, m_mean, m_t, w_stack, b_stack, alpha_stack,
                      gamma_stack, beta_stack, lin_w, lin_b):
    npad, cpad = x0.shape
    num_layers = w_stack.shape[0]
    gpad = m_mean.shape[0]

    flops = (2 * num_layers * (npad * cpad * cpad          # X @ W
                               + npad * npad * cpad        # A_hat @ XW
                               + 2 * gpad * npad * cpad    # mean + var gathers
                               + 2 * npad * gpad * cpad)   # mean + scale scatters
             + 2 * (gpad * npad * cpad + gpad * cpad * cpad))  # pool + linear
    args = (a_hat, x0, m_mean, m_t, w_stack, b_stack, alpha_stack,
            gamma_stack, beta_stack, lin_w, lin_b)
    bytes_accessed = (sum(int(a.size) * a.dtype.itemsize for a in args)
                      + gpad * cpad * 4)

    grid_spec = pltpu.PrefetchScalarGridSpec(
        num_scalar_prefetch=0,
        grid=(num_layers,),
        in_specs=[
            pl.BlockSpec((npad, npad), lambda l: (0, 0)),         # A_hat (resident)
            pl.BlockSpec((npad, cpad), lambda l: (0, 0)),         # x0    (resident)
            pl.BlockSpec((gpad, npad), lambda l: (0, 0)),         # m_mean (resident)
            pl.BlockSpec((npad, gpad), lambda l: (0, 0)),         # m_t    (resident)
            pl.BlockSpec((1, cpad, cpad), lambda l: (l, 0, 0)),   # W_l    (pipelined)
            pl.BlockSpec((1, 1, cpad), lambda l: (l, 0, 0)),      # b_l
            pl.BlockSpec((1, 1, cpad), lambda l: (l, 0, 0)),      # alpha_l
            pl.BlockSpec((1, 1, cpad), lambda l: (l, 0, 0)),      # gamma_l
            pl.BlockSpec((1, 1, cpad), lambda l: (l, 0, 0)),      # beta_l
            pl.BlockSpec((cpad, cpad), lambda l: (0, 0)),         # lin_w (resident)
            pl.BlockSpec((1, cpad), lambda l: (0, 0)),            # lin_b (resident)
        ],
        out_specs=pl.BlockSpec((gpad, cpad), lambda l: (0, 0)),
        scratch_shapes=[pltpu.VMEM((npad, cpad), jnp.bfloat16)],  # resident X
    )

    return pl.pallas_call(
        gcn_layer_kernel,
        out_shape=jax.ShapeDtypeStruct((gpad, cpad), jnp.float32),
        grid_spec=grid_spec,
        compiler_params=pltpu.CompilerParams(
            dimension_semantics=("arbitrary",),          # carried dep through x_scr
            vmem_limit_bytes=_vmem_limit_bytes()),
        cost_estimate=pl.CostEstimate(flops=flops,
                                      transcendentals=num_layers * gpad * cpad,
                                      bytes_accessed=bytes_accessed),
    )(*args)


# ---------------------------------------------------------------------------
# Graph preprocessing (plain JAX glue)
# ---------------------------------------------------------------------------
def build_dense_gcn_adj(edge_index, num_nodes):
    """Dense GCN-normalized adjacency with self loops, A_hat[dst, src]."""
    src, dst = edge_index[0], edge_index[1]
    a = jnp.zeros((num_nodes, num_nodes), jnp.float32).at[dst, src].add(1.0)
    a = a + jnp.eye(num_nodes, dtype=jnp.float32)          # self loops
    deg = a.sum(axis=1)
    dinv = jnp.where(deg > 0, jax.lax.rsqrt(deg), 0.0)
    return dinv[:, None] * a * dinv[None, :]


def build_batch_mats(batch, num_graphs):
    m = (batch[None, :] == jnp.arange(num_graphs)[:, None]).astype(jnp.float32)  # [G, N]
    cnt = m.sum(axis=1, keepdims=True)
    m_mean = m / jnp.maximum(cnt, 1.0)
    return m_mean, m.T                                      # [G, N], [N, G]


def _pad2(a, rows, cols):
    return jnp.zeros((rows, cols), a.dtype).at[:a.shape[0], :a.shape[1]].set(a)


def prepare_kernel_inputs(params, x, a_hat, m_mean, m_t):
    """Pad channels to 128 lanes, graphs to 8 sublanes, nodes to a multiple of
    128 lanes; stack per-layer params; cast matmul operands to bf16."""
    n = x.shape[0]
    npad = max(NPAD_MULT, ((n + NPAD_MULT - 1) // NPAD_MULT) * NPAD_MULT)
    layers = params["layers"]
    w_stack = jnp.stack([_pad2(l["w"], CPAD, CPAD) for l in layers]).astype(jnp.bfloat16)
    b_stack = jnp.stack([_pad2(l["b"], 1, CPAD) for l in layers])
    alpha_stack = jnp.stack([_pad2(l["alpha"], 1, CPAD) for l in layers])
    gamma_stack = jnp.stack([_pad2(l["gamma"], 1, CPAD) for l in layers])
    beta_stack = jnp.stack([_pad2(l["beta"], 1, CPAD) for l in layers])
    return dict(
        a_hat=_pad2(a_hat, npad, npad).astype(jnp.bfloat16),
        x0=_pad2(x, npad, CPAD).astype(jnp.bfloat16),
        m_mean=_pad2(m_mean, GPAD, npad),                    # fp32 (stats precision)
        m_t=_pad2(m_t, npad, GPAD).astype(jnp.bfloat16),     # 0/1 exact in bf16
        w_stack=w_stack, b_stack=b_stack, alpha_stack=alpha_stack,
        gamma_stack=gamma_stack, beta_stack=beta_stack,
        lin_w=_pad2(params["lin_w"], CPAD, CPAD).astype(jnp.bfloat16),
        lin_b=_pad2(params["lin_b"], 1, CPAD),
    )


# ---------------------------------------------------------------------------
# Parameters (deterministic, synthetic init — shapes from GCN.__init__)
# ---------------------------------------------------------------------------
def init_params(key, in_channels, hidden_channels, num_classes, num_layers):
    layers = []
    c_in = in_channels
    for _ in range(num_layers):
        key, kw = jax.random.split(key)
        layers.append(dict(
            w=jax.random.normal(kw, (c_in, hidden_channels), jnp.float32) * 0.1,
            b=jnp.zeros((1, hidden_channels), jnp.float32),          # GCNConv bias
            alpha=jnp.ones((1, hidden_channels), jnp.float32),       # GraphNorm mean_scale
            gamma=jnp.ones((1, hidden_channels), jnp.float32),       # GraphNorm weight
            beta=jnp.zeros((1, hidden_channels), jnp.float32),       # GraphNorm bias
        ))
        c_in = hidden_channels
    key, kl, kb = jax.random.split(key, 3)
    lin_w = jax.random.normal(kl, (hidden_channels, num_classes), jnp.float32) * 0.1
    lin_b = jax.random.normal(kb, (1, num_classes), jnp.float32) * 0.1
    return dict(layers=layers, lin_w=lin_w, lin_b=lin_b)


# ---------------------------------------------------------------------------
# Pure-JAX reference (fp32, faithful PyG GraphNorm two-pass formulation)
# ---------------------------------------------------------------------------
def gcn_forward_ref(params, x, a_hat, m_mean, m_t):
    for layer in params["layers"]:
        h = a_hat @ (x @ layer["w"]) + layer["b"]
        mean_n = m_t @ (m_mean @ h)
        hc = h - layer["alpha"] * mean_n
        var_n = m_t @ (m_mean @ (hc * hc))
        x = jnp.maximum(
            layer["gamma"] * hc * jax.lax.rsqrt(var_n + EPS) + layer["beta"], 0.0)
    return (m_mean @ x) @ params["lin_w"] + params["lin_b"]


# ---------------------------------------------------------------------------
if __name__ == "__main__":
    in_channels, hidden_channels, num_classes, num_layers = 8, 32, 4, 2
    nodes_per_graph, num_graphs = 8, 2
    num_nodes = nodes_per_graph * num_graphs

    key = jax.random.PRNGKey(0)
    key, kx = jax.random.split(key)
    x = jax.random.normal(kx, (num_nodes, in_channels), jnp.float32)

    # Two ring graphs (undirected edges in both directions).
    def ring_edges(offset, n):
        s = jnp.arange(n) + offset
        d = (jnp.arange(n) + 1) % n + offset
        return jnp.stack([jnp.concatenate([s, d]), jnp.concatenate([d, s])])

    edge_index = jnp.concatenate(
        [ring_edges(0, nodes_per_graph), ring_edges(nodes_per_graph, nodes_per_graph)],
        axis=1)
    batch = jnp.concatenate([jnp.zeros(nodes_per_graph, jnp.int32),
                             jnp.ones(nodes_per_graph, jnp.int32)])

    a_hat = build_dense_gcn_adj(edge_index, num_nodes)
    m_mean, m_t = build_batch_mats(batch, num_graphs)

    params = init_params(key, in_channels, hidden_channels, num_classes, num_layers)

    kin = prepare_kernel_inputs(params, x, a_hat, m_mean, m_t)
    out_padded = gcn_forward_fused(
        kin["a_hat"], kin["x0"], kin["m_mean"], kin["m_t"],
        kin["w_stack"], kin["b_stack"], kin["alpha_stack"], kin["gamma_stack"],
        kin["beta_stack"], kin["lin_w"], kin["lin_b"])
    out_padded = jax.block_until_ready(out_padded)
    out = out_padded[:num_graphs, :num_classes]

    ref = gcn_forward_ref(params, x, a_hat, m_mean, m_t)
    assert out.shape == (num_graphs, num_classes)
    # bf16 matmul operands -> loosened tolerance vs. the fp32 reference.
    assert jnp.allclose(out, ref, atol=3e-2, rtol=3e-2), "mismatch vs JAX reference"

    print("KERNEL_OK")
</pallas_src>

<mosaic_0001>
module attributes {stable_mosaic.version = 11 : i64} {
  func.func @gcn_layer_kernel(%arg0: i32, %arg1: memref<128x128xbf16, #tpu.memory_space<vmem>>, %arg2: memref<128x128xbf16, #tpu.memory_space<vmem>>, %arg3: memref<8x128xf32, #tpu.memory_space<vmem>>, %arg4: memref<128x8xbf16, #tpu.memory_space<vmem>>, %arg5: memref<1x128x128xbf16, #tpu.memory_space<vmem>>, %arg6: memref<1x1x128xf32, #tpu.memory_space<vmem>>, %arg7: memref<1x1x128xf32, #tpu.memory_space<vmem>>, %arg8: memref<1x1x128xf32, #tpu.memory_space<vmem>>, %arg9: memref<1x1x128xf32, #tpu.memory_space<vmem>>, %arg10: memref<128x128xbf16, #tpu.memory_space<vmem>>, %arg11: memref<1x128xf32, #tpu.memory_space<vmem>>, %arg12: memref<8x128xf32, #tpu.memory_space<vmem>>, %arg13: memref<128x128xbf16, #tpu.memory_space<vmem>>) attributes {dimension_semantics = [#tpu.dimension_semantics<arbitrary>], iteration_bounds = array<i64: 2>, scalar_prefetch = 0 : i64, scratch_operands = 1 : i64, tpu.core_type = #tpu.core_type<tc>, window_params = [{pipeline_mode = #tpu.pipeline_mode<synchronous>, transform_indices = @transform_0, window_bounds = array<i64: 128, 128>}, {pipeline_mode = #tpu.pipeline_mode<synchronous>, transform_indices = @transform_1, window_bounds = array<i64: 128, 128>}, {pipeline_mode = #tpu.pipeline_mode<synchronous>, transform_indices = @transform_2, window_bounds = array<i64: 8, 128>}, {pipeline_mode = #tpu.pipeline_mode<synchronous>, transform_indices = @transform_3, window_bounds = array<i64: 128, 8>}, {transform_indices = @transform_4, window_bounds = array<i64: 1, 128, 128>}, {transform_indices = @transform_5, window_bounds = array<i64: 1, 1, 128>}, {transform_indices = @transform_6, window_bounds = array<i64: 1, 1, 128>}, {transform_indices = @transform_7, window_bounds = array<i64: 1, 1, 128>}, {transform_indices = @transform_8, window_bounds = array<i64: 1, 1, 128>}, {pipeline_mode = #tpu.pipeline_mode<synchronous>, transform_indices = @transform_9, window_bounds = array<i64: 128, 128>}, {pipeline_mode = #tpu.pipeline_mode<synchronous>, transform_indices = @transform_10, window_bounds = array<i64: 1, 128>}, {pipeline_mode = #tpu.pipeline_mode<synchronous>, transform_indices = @transform_11, window_bounds = array<i64: 8, 128>}]} {
    %c0_i32 = arith.constant 0 : i32
    %0 = arith.cmpi eq, %arg0, %c0_i32 : i32
    %1 = arith.extui %0 : i1 to i32
    %c0_i32_0 = arith.constant 0 : i32
    %2 = arith.cmpi ne, %1, %c0_i32_0 : i32
    scf.if %2 {
      %c0_33 = arith.constant 0 : index
      %c0_34 = arith.constant 0 : index
      %47 = vector.load %arg2[%c0_33, %c0_34] : memref<128x128xbf16, #tpu.memory_space<vmem>>, vector<128x128xbf16>
      %c0_35 = arith.constant 0 : index
      %c0_36 = arith.constant 0 : index
      %48 = vector.load %arg13[%c0_35, %c0_36] : memref<128x128xbf16, #tpu.memory_space<vmem>>, vector<128x128xbf16>
      tpu.vector_store %arg13[%c0_35, %c0_36], %47 {strides = array<i32>} : memref<128x128xbf16, #tpu.memory_space<vmem>>, vector<128x128xbf16>,
    } else {
    }
    %c0 = arith.constant 0 : index
    %c0_1 = arith.constant 0 : index
    %3 = vector.load %arg13[%c0, %c0_1] : memref<128x128xbf16, #tpu.memory_space<vmem>>, vector<128x128xbf16>
    %c0_2 = arith.constant 0 : index
    %c0_3 = arith.constant 0 : index
    %4 = vector.load %arg1[%c0_2, %c0_3] : memref<128x128xbf16, #tpu.memory_space<vmem>>, vector<128x128xbf16>
    %c0_4 = arith.constant 0 : index
    %c0_5 = arith.constant 0 : index
    %5 = vector.load %arg3[%c0_4, %c0_5] : memref<8x128xf32, #tpu.memory_space<vmem>>, vector<8x128xf32>
    %c0_6 = arith.constant 0 : index
    %c0_7 = arith.constant 0 : index
    %6 = vector.load %arg4[%c0_6, %c0_7] : memref<128x8xbf16, #tpu.memory_space<vmem>>, vector<128x8xbf16>
    %c0_8 = arith.constant 0 : index
    %c0_9 = arith.constant 0 : index
    %c0_10 = arith.constant 0 : index
    %7 = vector.load %arg5[%c0_8, %c0_9, %c0_10] : memref<1x128x128xbf16, #tpu.memory_space<vmem>>, vector<1x128x128xbf16>
    %8 = vector.shape_cast %7 : vector<1x128x128xbf16> to vector<128x128xbf16>
    %cst = arith.constant dense<0.000000e+00> : vector<128x128xf32>
    %9 = tpu.matmul %3, %8, %cst {dimension_numbers = #tpu.dot_dimension_numbers<[1], [0], [0], [1], [0, 0, 1, 1], [], []>} : vector<128x128xbf16>, vector<128x128xbf16>, vector<128x128xf32> -> vector<128x128xf32>
    %10 = arith.truncf %9 : vector<128x128xf32> to vector<128x128xbf16>
    %cst_11 = arith.constant dense<0.000000e+00> : vector<128x128xf32>
    %11 = tpu.matmul %4, %10, %cst_11 {dimension_numbers = #tpu.dot_dimension_numbers<[1], [0], [0], [1], [0, 0, 1, 1], [], []>} : vector<128x128xbf16>, vector<128x128xbf16>, vector<128x128xf32> -> vector<128x128xf32>
    %c0_12 = arith.constant 0 : index
    %c0_13 = arith.constant 0 : index
    %c0_14 = arith.constant 0 : index
    %12 = vector.load %arg6[%c0_12, %c0_13, %c0_14] : memref<1x1x128xf32, #tpu.memory_space<vmem>>, vector<1x1x128xf32>
    %13 = vector.shape_cast %12 : vector<1x1x128xf32> to vector<1x128xf32>
    %14 = vector.broadcast %13 : vector<1x128xf32> to vector<128x128xf32>
    %15 = arith.addf %11, %14 : vector<128x128xf32>
    %c0_15 = arith.constant 0 : index
    %c0_16 = arith.constant 0 : index
    %c0_17 = arith.constant 0 : index
    %16 = vector.load %arg7[%c0_15, %c0_16, %c0_17] : memref<1x1x128xf32, #tpu.memory_space<vmem>>, vector<1x1x128xf32>
    %17 = vector.shape_cast %16 : vector<1x1x128xf32> to vector<1x128xf32>
    %c0_18 = arith.constant 0 : index
    %c0_19 = arith.constant 0 : index
    %c0_20 = arith.constant 0 : index
    %18 = vector.load %arg8[%c0_18, %c0_19, %c0_20] : memref<1x1x128xf32, #tpu.memory_space<vmem>>, vector<1x1x128xf32>
    %19 = vector.shape_cast %18 : vector<1x1x128xf32> to vector<1x128xf32>
    %c0_21 = arith.constant 0 : index
    %c0_22 = arith.constant 0 : index
    %c0_23 = arith.constant 0 : index
    %20 = vector.load %arg9[%c0_21, %c0_22, %c0_23] : memref<1x1x128xf32, #tpu.memory_space<vmem>>, vector<1x1x128xf32>
    %21 = vector.shape_cast %20 : vector<1x1x128xf32> to vector<1x128xf32>
    %cst_24 = arith.constant dense<0.000000e+00> : vector<8x128xf32>
    %22 = tpu.matmul %5, %15, %cst_24 {dimension_numbers = #tpu.dot_dimension_numbers<[1], [0], [0], [1], [0, 0, 1, 1], [], []>} : vector<8x128xf32>, vector<128x128xf32>, vector<8x128xf32> -> vector<8x128xf32>
    %23 = arith.truncf %22 : vector<8x128xf32> to vector<8x128xbf16>
    %cst_25 = arith.constant dense<0.000000e+00> : vector<128x128xf32>
    %24 = tpu.matmul %6, %23, %cst_25 {dimension_numbers = #tpu.dot_dimension_numbers<[1], [0], [0], [1], [0, 0, 1, 1], [], []>} : vector<128x8xbf16>, vector<8x128xbf16>, vector<128x128xf32> -> vector<128x128xf32>
    %25 = vector.broadcast %17 : vector<1x128xf32> to vector<128x128xf32>
    %26 = arith.mulf %25, %24 : vector<128x128xf32>
    %27 = arith.subf %15, %26 : vector<128x128xf32>
    %28 = arith.mulf %27, %27 : vector<128x128xf32>
    %cst_26 = arith.constant dense<0.000000e+00> : vector<8x128xf32>
    %29 = tpu.matmul %5, %28, %cst_26 {dimension_numbers = #tpu.dot_dimension_numbers<[1], [0], [0], [1], [0, 0, 1, 1], [], []>} : vector<8x128xf32>, vector<128x128xf32>, vector<8x128xf32> -> vector<8x128xf32>
    %cst_27 = arith.constant 9.99999974E-6 : f32
    %30 = vector.broadcast %cst_27 : f32 to vector<8x128xf32>
    %31 = arith.addf %29, %30 : vector<8x128xf32>
    %32 = math.rsqrt %31 : vector<8x128xf32>
    %33 = vector.broadcast %19 : vector<1x128xf32> to vector<8x128xf32>
    %34 = arith.mulf %33, %32 : vector<8x128xf32>
    %35 = arith.truncf %34 : vector<8x128xf32> to vector<8x128xbf16>
    %cst_28 = arith.constant dense<0.000000e+00> : vector<128x128xf32>
    %36 = tpu.matmul %6, %35, %cst_28 {dimension_numbers = #tpu.dot_dimension_numbers<[1], [0], [0], [1], [0, 0, 1, 1], [], []>} : vector<128x8xbf16>, vector<8x128xbf16>, vector<128x128xf32> -> vector<128x128xf32>
    %37 = arith.mulf %36, %27 : vector<128x128xf32>
    %38 = vector.broadcast %21 : vector<1x128xf32> to vector<128x128xf32>
    %39 = arith.addf %37, %38 : vector<128x128xf32>
    %cst_29 = arith.constant 0.000000e+00 : f32
    %40 = vector.broadcast %cst_29 : f32 to vector<128x128xf32>
    %41 = arith.maximumf %39, %40 : vector<128x128xf32>
    %42 = arith.truncf %41 : vector<128x128xf32> to vector<128x128xbf16>
    %c0_30 = arith.constant 0 : index
    %c0_31 = arith.constant 0 : index
    %43 = vector.load %arg13[%c0_30, %c0_31] : memref<128x128xbf16, #tpu.memory_space<vmem>>, vector<128x128xbf16>
    tpu.vector_store %arg13[%c0_30, %c0_31], %42 {strides = array<i32>} : memref<128x128xbf16, #tpu.memory_space<vmem>>, vector<128x128xbf16>,
    %c1_i32 = arith.constant 1 : i32
    %44 = arith.cmpi eq, %arg0, %c1_i32 : i32
    %45 = arith.extui %44 : i1 to i32
    %c0_i32_32 = arith.constant 0 : i32
    %46 = arith.cmpi ne, %45, %c0_i32_32 : i32
    scf.if %46 {
      %47 = arith.truncf %5 : vector<8x128xf32> to vector<8x128xbf16>
      %cst_33 = arith.constant dense<0.000000e+00> : vector<8x128xf32>
      %48 = tpu.matmul %47, %42, %cst_33 {dimension_numbers = #tpu.dot_dimension_numbers<[1], [0], [0], [1], [0, 0, 1, 1], [], []>} : vector<8x128xbf16>, vector<128x128xbf16>, vector<8x128xf32> -> vector<8x128xf32>
      %49 = arith.truncf %48 : vector<8x128xf32> to vector<8x128xbf16>
      %c0_34 = arith.constant 0 : index
      %c0_35 = arith.constant 0 : index
      %50 = vector.load %arg10[%c0_34, %c0_35] : memref<128x128xbf16, #tpu.memory_space<vmem>>, vector<128x128xbf16>
      %cst_36 = arith.constant dense<0.000000e+00> : vector<8x128xf32>
      %51 = tpu.matmul %49, %50, %cst_36 {dimension_numbers = #tpu.dot_dimension_numbers<[1], [0], [0], [1], [0, 0, 1, 1], [], []>} : vector<8x128xbf16>, vector<128x128xbf16>, vector<8x128xf32> -> vector<8x128xf32>
      %c0_37 = arith.constant 0 : index
      %c0_38 = arith.constant 0 : index
      %52 = vector.load %arg11[%c0_37, %c0_38] : memref<1x128xf32, #tpu.memory_space<vmem>>, vector<1x128xf32>
      %53 = vector.broadcast %52 : vector<1x128xf32> to vector<8x128xf32>
      %54 = arith.addf %51, %53 : vector<8x128xf32>
      %c0_39 = arith.constant 0 : index
      %c0_40 = arith.constant 0 : index
      %55 = vector.load %arg12[%c0_39, %c0_40] : memref<8x128xf32, #tpu.memory_space<vmem>>, vector<8x128xf32>
      tpu.vector_store %arg12[%c0_39, %c0_40], %54 {strides = array<i32>} : memref<8x128xf32, #tpu.memory_space<vmem>>, vector<8x128xf32>,
    } else {
    }
    return
  }
  func.func @transform_0(%arg0: i32) -> (i32, i32) {
    %c0_i32 = arith.constant 0 : i32
    %c0_i32_0 = arith.constant 0 : i32
    %c0_i32_1 = arith.constant 0 : i32
    return %c0_i32, %c0_i32_0 : i32, i32
  }
  func.func @transform_1(%arg0: i32) -> (i32, i32) {
    %c0_i32 = arith.constant 0 : i32
    %c0_i32_0 = arith.constant 0 : i32
    %c0_i32_1 = arith.constant 0 : i32
    return %c0_i32, %c0_i32_0 : i32, i32
  }
  func.func @transform_2(%arg0: i32) -> (i32, i32) {
    %c0_i32 = arith.constant 0 : i32
    %c0_i32_0 = arith.constant 0 : i32
    %c0_i32_1 = arith.constant 0 : i32
    return %c0_i32, %c0_i32_0 : i32, i32
  }
  func.func @transform_3(%arg0: i32) -> (i32, i32) {
    %c0_i32 = arith.constant 0 : i32
    %c0_i32_0 = arith.constant 0 : i32
    %c0_i32_1 = arith.constant 0 : i32
    return %c0_i32, %c0_i32_0 : i32, i32
  }
  func.func @transform_4(%arg0: i32) -> (i32, i32, i32) {
    %c0_i32 = arith.constant 0 : i32
    %c0_i32_0 = arith.constant 0 : i32
    %c0_i32_1 = arith.constant 0 : i32
    return %arg0, %c0_i32, %c0_i32_0 : i32, i32, i32
  }
  func.func @transform_5(%arg0: i32) -> (i32, i32, i32) {
    %c0_i32 = arith.constant 0 : i32
    %c0_i32_0 = arith.constant 0 : i32
    %c0_i32_1 = arith.constant 0 : i32
    return %arg0, %c0_i32, %c0_i32_0 : i32, i32, i32
  }
  func.func @transform_6(%arg0: i32) -> (i32, i32, i32) {
    %c0_i32 = arith.constant 0 : i32
    %c0_i32_0 = arith.constant 0 : i32
    %c0_i32_1 = arith.constant 0 : i32
    return %arg0, %c0_i32, %c0_i32_0 : i32, i32, i32
  }
  func.func @transform_7(%arg0: i32) -> (i32, i32, i32) {
    %c0_i32 = arith.constant 0 : i32
    %c0_i32_0 = arith.constant 0 : i32
    %c0_i32_1 = arith.constant 0 : i32
    return %arg0, %c0_i32, %c0_i32_0 : i32, i32, i32
  }
  func.func @transform_8(%arg0: i32) -> (i32, i32, i32) {
    %c0_i32 = arith.constant 0 : i32
    %c0_i32_0 = arith.constant 0 : i32
    %c0_i32_1 = arith.constant 0 : i32
    return %arg0, %c0_i32, %c0_i32_0 : i32, i32, i32
  }
  func.func @transform_9(%arg0: i32) -> (i32, i32) {
    %c0_i32 = arith.constant 0 : i32
    %c0_i32_0 = arith.constant 0 : i32
    %c0_i32_1 = arith.constant 0 : i32
    return %c0_i32, %c0_i32_0 : i32, i32
  }
  func.func @transform_10(%arg0: i32) -> (i32, i32) {
    %c0_i32 = arith.constant 0 : i32
    %c0_i32_0 = arith.constant 0 : i32
    %c0_i32_1 = arith.constant 0 : i32
    return %c0_i32, %c0_i32_0 : i32, i32
  }
  func.func @transform_11(%arg0: i32) -> (i32, i32) {
    %c0_i32 = arith.constant 0 : i32
    %c0_i32_0 = arith.constant 0 : i32
    %c0_i32_1 = arith.constant 0 : i32
    return %c0_i32, %c0_i32_0 : i32, i32
  }
}

</mosaic_0001>

<llo_original>
// kernel: gcn_forward_fused.1
$region0: #{gcn_forward_fused.1}
  #allocation0 [shape = 'u32[]', space=smem, size = 0x4, offset = 0x4, fixed_abs, tag = 'smem constant byte address 0x4 - core index']
  #allocation1 [shape = 'u32[144,128]{1,0:T(1,128)}', space=vmem, size = 0x12000, scoped, tag = 'internal scratch']
  #allocation2 [shape = 'bf16[128,128]{1,0:T(8,128)(2,1)}', space=vmem, size = 0x8000, scoped, tag = 'scratch operand']
  %s0 = inlined_call_operand.vmem [shape: bf16[128,128], index: 0, kind: input, shape index: {}]
  %s1 = inlined_call_operand.hbm [shape: bf16[128,128], index: 1, kind: input, shape index: {}]
  %s2 = inlined_call_operand.hbm [shape: f32[8,128], index: 2, kind: input, shape index: {}]
  %s3 = inlined_call_operand.vmem [shape: bf16[128,8], index: 3, kind: input, shape index: {}]
  %s4 = inlined_call_operand.hbm [shape: bf16[2,128,128], index: 4, kind: input, shape index: {}]
  %s5 = inlined_call_operand.vmem [shape: f32[2,1,128], index: 5, kind: input, shape index: {}]
  %s6 = inlined_call_operand.vmem [shape: f32[2,1,128], index: 6, kind: input, shape index: {}]
  %s7 = inlined_call_operand.vmem [shape: f32[2,1,128], index: 7, kind: input, shape index: {}]
  %s8 = inlined_call_operand.vmem [shape: f32[2,1,128], index: 8, kind: input, shape index: {}]
  %s9 = inlined_call_operand.hbm [shape: bf16[128,128], index: 9, kind: input, shape index: {}]
  %s10 = inlined_call_operand.vmem [shape: f32[1,128], index: 10, kind: input, shape index: {}]
  %s11 = inlined_call_operand.hbm [shape: f32[8,128], index: 11, kind: output, shape index: {}]
  %s12 = sld [smem:[#allocation0]]
  $region101: #{gcn_forward_fused.1} parent=0
    _
  %s14 = ssub.s32 1, %s12
  %s15 = scalar_select 0, %s14, %s12
  $region1: #{gcn_forward_fused.1} parent=0
    #allocation3 [shape = 'u8[32768]{0}', space=vmem, size = 0x8000, scoped, tag = 'input window, operand 1, single buffered']
    #allocation4 [shape = 's32[2]{0}', space=sflag, size = 0x8, scoped, tag = 'scoped memory for gcn_forward_fused.1']
    #allocation5 [shape = 's32[2]{0}', space=sflag, size = 0x8, scoped, tag = 'scoped memory for gcn_forward_fused.1']
    #allocation6 [shape = 'u8[4096]{0}', space=vmem, size = 0x1000, scoped, tag = 'input window, operand 2, single buffered']
    #allocation7 [shape = 's32[1]{0}', space=sflag, size = 0x4, scoped, tag = 'scoped memory for gcn_forward_fused.1']
    #allocation8 [shape = 'u8[65536]{0}', space=vmem, size = 0x10000, scoped, tag = 'input window, operand 4']
    #allocation9 [shape = 'u8[32768]{0}', space=vmem, size = 0x8000, scoped, tag = 'input window, operand 9, single buffered']
    #allocation10 [shape = 'u8[4096]{0}', space=vmem, size = 0x1000, scoped, tag = 'output window, operand 0, single buffered']
    %16 = vsyncpa [#allocation4], 0
    %17 = vsyncpa [#allocation7], 0
    %18 = vsyncpa [#allocation5], 0
    loop: start=0, step=1, limit=4
    $region2: #{gcn_forward_fused.1} parent=1 // loop_pre_header
      _
    $region3: #{gcn_forward_fused.1} parent=1 // loop_header
      %s20 = sphi 0, %s24
      %p21 = scmp.ge.s32.totalorder %s20, 4
      %s28 = sphi 0, %s28
      %s30 = sphi 0, %s28
      %s31 = sphi 0, %s30
      %s45 = sphi 0, %s31
      %s49 = sphi 0, %s49
      %s51 = sphi 0, %s49
      %s52 = sphi 0, %s51
      %s66 = sphi 0, %s52
      %s70 = sphi 0, %s70
      %s72 = sphi 0, %s70
      %s73 = sphi 0, %s72
      %s87 = sphi 0, %s73
      %s91 = sphi 0, %s91
      %s93 = sphi 0, %s91
      %s94 = sphi 0, %s93
      %s108 = sphi 0, %s94
      %s114 = sphi 0, %s116
      %s117 = sphi 0, %s114
      %s118 = sphi 0, %s117
      %s134 = sphi 0, %s118
      %s140 = sphi 0, %s142
      %s143 = sphi 0, %s140
      %s144 = sphi 0, %s143
      %s160 = sphi 0, %s144
      %s166 = sphi 0, %s168
      %s169 = sphi 0, %s166
      %s170 = sphi 0, %s169
      %s186 = sphi 0, %s170
      %s192 = sphi 0, %s194
      %s195 = sphi 0, %s192
      %s196 = sphi 0, %s195
      %s212 = sphi 0, %s196
      %s218 = sphi 0, %s220
      %s221 = sphi 0, %s218
      %s222 = sphi 0, %s221
      %s238 = sphi 0, %s222
      %s242 = sphi 0, %s242
      %s244 = sphi 0, %s242
      %s245 = sphi 0, %s244
      %s259 = sphi 0, %s245
      %s263 = sphi 0, %s263
      %s265 = sphi 0, %s263
      %s266 = sphi 0, %s265
      %s280 = sphi 0, %s266
      %s284 = sphi 0, %s284
      %s286 = sphi 0, %s284
      %s287 = sphi 0, %s286
      %s301 = sphi 0, %s287
    $region4: #{gcn_forward_fused.1} parent=1 // loop_header_branch
      %23 = sbr.rel (%p21) target = $region8
    $region5: #{gcn_forward_fused.1} parent=1 // loop_body
      %s25 = ssub.s32 %s20, 1
      %s26 = ssub.s32 %s20, 2
      %s27 = sadd.s32 %s20, 1
      %s29 = sadd.s32 %s28, 1
      %p32 = scmp.eq.s32.totalorder %s20, 1
      %p33 = scmp.ne.s32.totalorder %s28, %s30
      %p34 = scmp.eq.s32.totalorder %s20, 0
      %p35 = por %p33, %p34
      %p36 = scmp.ne.s32.totalorder %s28, %s30
      %p37 = scmp.eq.s32.totalorder %s25, 1
      %p38 = por %p36, %p37
      %p39 = scmp.ne.s32.totalorder %s30, %s31
      %p40 = scmp.eq.s32.totalorder %s25, 0
      %p41 = por %p39, %p40
      %p42 = scmp.ne.s32.totalorder %s30, %s31
      %p43 = scmp.eq.s32.totalorder %s26, 1
      %p44 = por %p42, %p43
      %p46 = scmp.ne.s32.totalorder %s31, %s45
      %p47 = scmp.eq.s32.totalorder %s26, 0
      %p48 = por %p46, %p47
      %s50 = sadd.s32 %s49, 1
      %p53 = scmp.eq.s32.totalorder %s20, 1
      %p54 = scmp.ne.s32.totalorder %s49, %s51
      %p55 = scmp.eq.s32.totalorder %s20, 0
      %p56 = por %p54, %p55
      %p57 = scmp.ne.s32.totalorder %s49, %s51
      %p58 = scmp.eq.s32.totalorder %s25, 1
      %p59 = por %p57, %p58
      %p60 = scmp.ne.s32.totalorder %s51, %s52
      %p61 = scmp.eq.s32.totalorder %s25, 0
      %p62 = por %p60, %p61
      %p63 = scmp.ne.s32.totalorder %s51, %s52
      %p64 = scmp.eq.s32.totalorder %s26, 1
      %p65 = por %p63, %p64
      %p67 = scmp.ne.s32.totalorder %s52, %s66
      %p68 = scmp.eq.s32.totalorder %s26, 0
      %p69 = por %p67, %p68
      %s71 = sadd.s32 %s70, 1
      %p74 = scmp.eq.s32.totalorder %s20, 1
      %p75 = scmp.ne.s32.totalorder %s70, %s72
      %p76 = scmp.eq.s32.totalorder %s20, 0
      %p77 = por %p75, %p76
      %p78 = scmp.ne.s32.totalorder %s70, %s72
      %p79 = scmp.eq.s32.totalorder %s25, 1
      %p80 = por %p78, %p79
      %p81 = scmp.ne.s32.totalorder %s72, %s73
      %p82 = scmp.eq.s32.totalorder %s25, 0
      %p83 = por %p81, %p82
      %p84 = scmp.ne.s32.totalorder %s72, %s73
      %p85 = scmp.eq.s32.totalorder %s26, 1
      %p86 = por %p84, %p85
      %p88 = scmp.ne.s32.totalorder %s73, %s87
      %p89 = scmp.eq.s32.totalorder %s26, 0
      %p90 = por %p88, %p89
      %s92 = sadd.s32 %s91, 1
      %p95 = scmp.eq.s32.totalorder %s20, 1
      %p96 = scmp.ne.s32.totalorder %s91, %s93
      %p97 = scmp.eq.s32.totalorder %s20, 0
      %p98 = por %p96, %p97
      %p99 = scmp.ne.s32.totalorder %s91, %s93
      %p100 = scmp.eq.s32.totalorder %s25, 1
      %p101 = por %p99, %p100
      %p102 = scmp.ne.s32.totalorder %s93, %s94
      %p103 = scmp.eq.s32.totalorder %s25, 0
      %p104 = por %p102, %p103
      %p105 = scmp.ne.s32.totalorder %s93, %s94
      %p106 = scmp.eq.s32.totalorder %s26, 1
      %p107 = por %p105, %p106
      %p109 = scmp.ne.s32.totalorder %s94, %s108
      %p110 = scmp.eq.s32.totalorder %s26, 0
      %p111 = por %p109, %p110
      %s112 = ssub.s32 %s20, %s27
      %p113 = scmp.eq.s32.totalorder %s112, 0
      %s115 = sadd.s32 %s114, 1
      %s116 = scalar_select %p113, %s114, %s115
      %p119 = pneg %p113
      %p120 = scmp.eq.s32.totalorder %s20, 1
      %p121 = por %p119, %p120
      %p122 = scmp.ne.s32.totalorder %s114, %s117
      %p123 = scmp.eq.s32.totalorder %s20, 0
      %p124 = por %p122, %p123
      %p125 = scmp.ne.s32.totalorder %s114, %s117
      %p126 = scmp.eq.s32.totalorder %s25, 1
      %p127 = por %p125, %p126
      %p128 = scmp.ne.s32.totalorder %s117, %s118
      %p129 = scmp.eq.s32.totalorder %s25, 0
      %p130 = por %p128, %p129
      %p131 = scmp.ne.s32.totalorder %s117, %s118
      %p132 = scmp.eq.s32.totalorder %s26, 1
      %p133 = por %p131, %p132
      %p135 = scmp.ne.s32.totalorder %s118, %s134
      %p136 = scmp.eq.s32.totalorder %s26, 0
      %p137 = por %p135, %p136
      %s138 = ssub.s32 %s20, %s27
      %p139 = scmp.eq.s32.totalorder %s138, 0
      %s141 = sadd.s32 %s140, 1
      %s142 = scalar_select %p139, %s140, %s141
      %p145 = pneg %p139
      %p146 = scmp.eq.s32.totalorder %s20, 1
      %p147 = por %p145, %p146
      %p148 = scmp.ne.s32.totalorder %s140, %s143
      %p149 = scmp.eq.s32.totalorder %s20, 0
      %p150 = por %p148, %p149
      %p151 = scmp.ne.s32.totalorder %s140, %s143
      %p152 = scmp.eq.s32.totalorder %s25, 1
      %p153 = por %p151, %p152
      %p154 = scmp.ne.s32.totalorder %s143, %s144
      %p155 = scmp.eq.s32.totalorder %s25, 0
      %p156 = por %p154, %p155
      %p157 = scmp.ne.s32.totalorder %s143, %s144
      %p158 = scmp.eq.s32.totalorder %s26, 1
      %p159 = por %p157, %p158
      %p161 = scmp.ne.s32.totalorder %s144, %s160
      %p162 = scmp.eq.s32.totalorder %s26, 0
      %p163 = por %p161, %p162
      %s164 = ssub.s32 %s20, %s27
      %p165 = scmp.eq.s32.totalorder %s164, 0
      %s167 = sadd.s32 %s166, 1
      %s168 = scalar_select %p165, %s166, %s167
      %p171 = pneg %p165
      %p172 = scmp.eq.s32.totalorder %s20, 1
      %p173 = por %p171, %p172
      %p174 = scmp.ne.s32.totalorder %s166, %s169
      %p175 = scmp.eq.s32.totalorder %s20, 0
      %p176 = por %p174, %p175
      %p177 = scmp.ne.s32.totalorder %s166, %s169
      %p178 = scmp.eq.s32.totalorder %s25, 1
      %p179 = por %p177, %p178
      %p180 = scmp.ne.s32.totalorder %s169, %s170
      %p181 = scmp.eq.s32.totalorder %s25, 0
      %p182 = por %p180, %p181
      %p183 = scmp.ne.s32.totalorder %s169, %s170
      %p184 = scmp.eq.s32.totalorder %s26, 1
      %p185 = por %p183, %p184
      %p187 = scmp.ne.s32.totalorder %s170, %s186
      %p188 = scmp.eq.s32.totalorder %s26, 0
      %p189 = por %p187, %p188
      %s190 = ssub.s32 %s20, %s27
      %p191 = scmp.eq.s32.totalorder %s190, 0
      %s193 = sadd.s32 %s192, 1
      %s194 = scalar_select %p191, %s192, %s193
      %p197 = pneg %p191
      %p198 = scmp.eq.s32.totalorder %s20, 1
      %p199 = por %p197, %p198
      %p200 = scmp.ne.s32.totalorder %s192, %s195
      %p201 = scmp.eq.s32.totalorder %s20, 0
      %p202 = por %p200, %p201
      %p203 = scmp.ne.s32.totalorder %s192, %s195
      %p204 = scmp.eq.s32.totalorder %s25, 1
      %p205 = por %p203, %p204
      %p206 = scmp.ne.s32.totalorder %s195, %s196
      %p207 = scmp.eq.s32.totalorder %s25, 0
      %p208 = por %p206, %p207
      %p209 = scmp.ne.s32.totalorder %s195, %s196
      %p210 = scmp.eq.s32.totalorder %s26, 1
      %p211 = por %p209, %p210
      %p213 = scmp.ne.s32.totalorder %s196, %s212
      %p214 = scmp.eq.s32.totalorder %s26, 0
      %p215 = por %p213, %p214
      %s216 = ssub.s32 %s20, %s27
      %p217 = scmp.eq.s32.totalorder %s216, 0
      %s219 = sadd.s32 %s218, 1
      %s220 = scalar_select %p217, %s218, %s219
      %p223 = pneg %p217
      %p224 = scmp.eq.s32.totalorder %s20, 1
      %p225 = por %p223, %p224
      %p226 = scmp.ne.s32.totalorder %s218, %s221
      %p227 = scmp.eq.s32.totalorder %s20, 0
      %p228 = por %p226, %p227
      %p229 = scmp.ne.s32.totalorder %s218, %s221
      %p230 = scmp.eq.s32.totalorder %s25, 1
      %p231 = por %p229, %p230
      %p232 = scmp.ne.s32.totalorder %s221, %s222
      %p233 = scmp.eq.s32.totalorder %s25, 0
      %p234 = por %p232, %p233
      %p235 = scmp.ne.s32.totalorder %s221, %s222
      %p236 = scmp.eq.s32.totalorder %s26, 1
      %p237 = por %p235, %p236
      %p239 = scmp.ne.s32.totalorder %s222, %s238
      %p240 = scmp.eq.s32.totalorder %s26, 0
      %p241 = por %p239, %p240
      %s243 = sadd.s32 %s242, 1
      %p246 = scmp.eq.s32.totalorder %s20, 1
      %p247 = scmp.ne.s32.totalorder %s242, %s244
      %p248 = scmp.eq.s32.totalorder %s20, 0
      %p249 = por %p247, %p248
      %p250 = scmp.ne.s32.totalorder %s242, %s244
      %p251 = scmp.eq.s32.totalorder %s25, 1
      %p252 = por %p250, %p251
      %p253 = scmp.ne.s32.totalorder %s244, %s245
      %p254 = scmp.eq.s32.totalorder %s25, 0
      %p255 = por %p253, %p254
      %p256 = scmp.ne.s32.totalorder %s244, %s245
      %p257 = scmp.eq.s32.totalorder %s26, 1
      %p258 = por %p256, %p257
      %p260 = scmp.ne.s32.totalorder %s245, %s259
      %p261 = scmp.eq.s32.totalorder %s26, 0
      %p262 = por %p260, %p261
      %s264 = sadd.s32 %s263, 1
      %p267 = scmp.eq.s32.totalorder %s20, 1
      %p268 = scmp.ne.s32.totalorder %s263, %s265
      %p269 = scmp.eq.s32.totalorder %s20, 0
      %p270 = por %p268, %p269
      %p271 = scmp.ne.s32.totalorder %s263, %s265
      %p272 = scmp.eq.s32.totalorder %s25, 1
      %p273 = por %p271, %p272
      %p274 = scmp.ne.s32.totalorder %s265, %s266
      %p275 = scmp.eq.s32.totalorder %s25, 0
      %p276 = por %p274, %p275
      %p277 = scmp.ne.s32.totalorder %s265, %s266
      %p278 = scmp.eq.s32.totalorder %s26, 1
      %p279 = por %p277, %p278
      %p281 = scmp.ne.s32.totalorder %s266, %s280
      %p282 = scmp.eq.s32.totalorder %s26, 0
      %p283 = por %p281, %p282
      %s285 = sadd.s32 %s284, 1
      %p288 = scmp.eq.s32.totalorder %s20, 1
      %p289 = scmp.ne.s32.totalorder %s284, %s286
      %p290 = scmp.eq.s32.totalorder %s20, 0
      %p291 = por %p289, %p290
      %p292 = scmp.ne.s32.totalorder %s284, %s286
      %p293 = scmp.eq.s32.totalorder %s25, 1
      %p294 = por %p292, %p293
      %p295 = scmp.ne.s32.totalorder %s286, %s287
      %p296 = scmp.eq.s32.totalorder %s25, 0
      %p297 = por %p295, %p296
      %p298 = scmp.ne.s32.totalorder %s286, %s287
      %p299 = scmp.eq.s32.totalorder %s26, 1
      %p300 = por %p298, %p299
      %p302 = scmp.ne.s32.totalorder %s287, %s301
      %p303 = scmp.eq.s32.totalorder %s26, 0
      %p304 = por %p302, %p303
      %p305 = scmp.le.s32.totalorder 1, %s20
      %p306 = scmp.lt.s32.totalorder %s20, 3
      %p307 = pnand %p305, %p306
      %p308 = pneg %p307
      // Predicated region
      $region9: #{gcn_forward_fused.1} parent=5 // pred_check
        _
      $region10: #{gcn_forward_fused.1} parent=5 // pred_check_branch
        %310 = sbr.rel (%p307) target = $region12
      $region11: #{gcn_forward_fused.1} parent=5 // pred_region
        %s311 = ssub.s32 %s20, 1
        // Predicated region
        $region13: #{gcn_forward_fused.1} parent=11 // pred_check
          %p312 = pneg %p41
        $region14: #{gcn_forward_fused.1} parent=11 // pred_check_branch
          %314 = sbr.rel (%p312) target = $region16
        $region15: #{gcn_forward_fused.1} parent=11 // pred_region
          _
        $region16: #{gcn_forward_fused.1} parent=11 // pred_fallthru
          _
        // Predicated region
        $region17: #{gcn_forward_fused.1} parent=11 // pred_check
          %p315 = pneg %p62
        $region18: #{gcn_forward_fused.1} parent=11 // pred_check_branch
          %317 = sbr.rel (%p315) target = $region20
        $region19: #{gcn_forward_fused.1} parent=11 // pred_region
          %s319 = ssub.s32 1024, 1024
          %320 = vsyncadd [#allocation4], %s319
          %s321 = sshll.u32 [#allocation3], 4
          %s322 = int_to_ptr.vmem [resolvable:$true] %s321
          %327 = dma.hbm_to_vmem [thread:$0]  %s1, 1024, %s322, [#allocation4], 64, 64, 4
        $region20: #{gcn_forward_fused.1} parent=11 // pred_fallthru
          _
        // Predicated region
        $region21: #{gcn_forward_fused.1} parent=11 // pred_check
          %p328 = pneg %p83
        $region22: #{gcn_forward_fused.1} parent=11 // pred_check_branch
          %330 = sbr.rel (%p328) target = $region24
        $region23: #{gcn_forward_fused.1} parent=11 // pred_region
          %s332 = ssub.s32 128, 128
          %333 = vsyncadd [#allocation7], %s332
          %s335 = sshll.u32 [#allocation6], 4
          %s336 = int_to_ptr.vmem [resolvable:$true] %s335
          %338 = dma.hbm_to_vmem [thread:$0]  %s2, 128, %s336, [#allocation7]
        $region24: #{gcn_forward_fused.1} parent=11 // pred_fallthru
          _
        // Predicated region
        $region25: #{gcn_forward_fused.1} parent=11 // pred_check
          %p339 = pneg %p104
        $region26: #{gcn_forward_fused.1} parent=11 // pred_check_branch
          %341 = sbr.rel (%p339) target = $region28
        $region27: #{gcn_forward_fused.1} parent=11 // pred_region
          _
        $region28: #{gcn_forward_fused.1} parent=11 // pred_fallthru
          _
        // Predicated region
        $region29: #{gcn_forward_fused.1} parent=11 // pred_check
          %p342 = pneg %p255
        $region30: #{gcn_forward_fused.1} parent=11 // pred_check_branch
          %344 = sbr.rel (%p342) target = $region32
        $region31: #{gcn_forward_fused.1} parent=11 // pred_region
          %s346 = ssub.s32 1024, 1024
          %347 = vsyncadd [#allocation7], %s346
          %s348 = sshll.u32 [#allocation9], 4
          %s349 = int_to_ptr.vmem [resolvable:$true] %s348
          %354 = dma.hbm_to_vmem [thread:$0]  %s9, 1024, %s349, [#allocation7], 64, 64, 4
        $region32: #{gcn_forward_fused.1} parent=11 // pred_fallthru
          _
        // Predicated region
        $region33: #{gcn_forward_fused.1} parent=11 // pred_check
          %p355 = pneg %p276
        $region34: #{gcn_forward_fused.1} parent=11 // pred_check_branch
          %357 = sbr.rel (%p355) target = $region36
        $region35: #{gcn_forward_fused.1} parent=11 // pred_region
          _
        $region36: #{gcn_forward_fused.1} parent=11 // pred_fallthru
          _
      $region12: #{gcn_forward_fused.1} parent=5 // pred_fallthru
        _
      %p358 = scmp.lt.s32.totalorder %s20, 2
      // Predicated region
      $region37: #{gcn_forward_fused.1} parent=5 // pred_check
        %p359 = pneg %p358
      $region38: #{gcn_forward_fused.1} parent=5 // pred_check_branch
        %361 = sbr.rel (%p359) target = $region40
      $region39: #{gcn_forward_fused.1} parent=5 // pred_region
        // Predicated region
        $region41: #{gcn_forward_fused.1} parent=39 // pred_check
          %p362 = pneg %p124
        $region42: #{gcn_forward_fused.1} parent=39 // pred_check_branch
          %364 = sbr.rel (%p362) target = $region44
        $region43: #{gcn_forward_fused.1} parent=39 // pred_region
          %s365 = sand.u32 %s20, 1
          %s366 = scalar_lea.sflag [#allocation4], %s365
          %s367 = sand.u32 %s114, 1
          %s368 = smul.addr %s367, 64
          %s369 = scalar_lea.vmem [#allocation8], %s368
          %s371 = ssub.s32 1024, 1024
          %372 = vsyncadd %s366, %s371
          %s373 = smul.addr %s20, 16
          %s374 = smul.addr %s373, 64
          %s375 = scalar_lea.hbm %s4, %s374
          %s376 = sshll.u32 %s369, 4
          %s377 = int_to_ptr.vmem [resolvable:$true] %s376
          %382 = dma.hbm_to_vmem [thread:$0]  %s375, 1024, %s377, %s366, 64, 64, 4
        $region44: #{gcn_forward_fused.1} parent=39 // pred_fallthru
          _
        // Predicated region
        $region45: #{gcn_forward_fused.1} parent=39 // pred_check
          %p383 = pneg %p150
        $region46: #{gcn_forward_fused.1} parent=39 // pred_check_branch
          %385 = sbr.rel (%p383) target = $region48
        $region47: #{gcn_forward_fused.1} parent=39 // pred_region
          %p386 = scmp.lt.s32.totalorder %s20, 1
          %s387 = scalar_select %p386, %s20, 1
          %s388 = scalar_lea.vmem %s5, %s387
        $region48: #{gcn_forward_fused.1} parent=39 // pred_fallthru
          _
        // Predicated region
        $region49: #{gcn_forward_fused.1} parent=39 // pred_check
          %p389 = pneg %p176
        $region50: #{gcn_forward_fused.1} parent=39 // pred_check_branch
          %391 = sbr.rel (%p389) target = $region52
        $region51: #{gcn_forward_fused.1} parent=39 // pred_region
          %p392 = scmp.lt.s32.totalorder %s20, 1
          %s393 = scalar_select %p392, %s20, 1
          %s394 = scalar_lea.vmem %s6, %s393
        $region52: #{gcn_forward_fused.1} parent=39 // pred_fallthru
          _
        // Predicated region
        $region53: #{gcn_forward_fused.1} parent=39 // pred_check
          %p395 = pneg %p202
        $region54: #{gcn_forward_fused.1} parent=39 // pred_check_branch
          %397 = sbr.rel (%p395) target = $region56
        $region55: #{gcn_forward_fused.1} parent=39 // pred_region
          %p398 = scmp.lt.s32.totalorder %s20, 1
          %s399 = scalar_select %p398, %s20, 1
          %s400 = scalar_lea.vmem %s7, %s399
        $region56: #{gcn_forward_fused.1} parent=39 // pred_fallthru
          _
        // Predicated region
        $region57: #{gcn_forward_fused.1} parent=39 // pred_check
          %p401 = pneg %p228
        $region58: #{gcn_forward_fused.1} parent=39 // pred_check_branch
          %403 = sbr.rel (%p401) target = $region60
        $region59: #{gcn_forward_fused.1} parent=39 // pred_region
          %p404 = scmp.lt.s32.totalorder %s20, 1
          %s405 = scalar_select %p404, %s20, 1
          %s406 = scalar_lea.vmem %s8, %s405
        $region60: #{gcn_forward_fused.1} parent=39 // pred_fallthru
          _
      $region40: #{gcn_forward_fused.1} parent=5 // pred_fallthru
        _
      %p407 = scmp.le.s32.totalorder 1, %s20
      %p408 = scmp.lt.s32.totalorder %s20, 3
      %p409 = pnand %p407, %p408
      %p410 = pneg %p409
      // Predicated region
      $region61: #{gcn_forward_fused.1} parent=5 // pred_check
        _
      $region62: #{gcn_forward_fused.1} parent=5 // pred_check_branch
        %412 = sbr.rel (%p409) target = $region64
      $region63: #{gcn_forward_fused.1} parent=5 // pred_region
        %s413 = ssub.s32 %s20, 1
        // Predicated region
        $region65: #{gcn_forward_fused.1} parent=63 // pred_check
          %p414 = pneg %p62
        $region66: #{gcn_forward_fused.1} parent=63 // pred_check_branch
          %416 = sbr.rel (%p414) target = $region68
        $region67: #{gcn_forward_fused.1} parent=63 // pred_region
          %417 = dma.done [#allocation4], 1024
        $region68: #{gcn_forward_fused.1} parent=63 // pred_fallthru
          _
        // Predicated region
        $region69: #{gcn_forward_fused.1} parent=63 // pred_check
          %p418 = pneg %p83
        $region70: #{gcn_forward_fused.1} parent=63 // pred_check_branch
          %420 = sbr.rel (%p418) target = $region72
        $region71: #{gcn_forward_fused.1} parent=63 // pred_region
          %421 = dma.done [#allocation7], 128
        $region72: #{gcn_forward_fused.1} parent=63 // pred_fallthru
          _
        %s422 = sand.u32 %s25, 1
        %s423 = scalar_lea.sflag [#allocation4], %s422
        %s424 = sand.u32 %s117, 1
        %s425 = smul.addr %s424, 64
        %s426 = scalar_lea.vmem [#allocation8], %s425
        // Predicated region
        $region73: #{gcn_forward_fused.1} parent=63 // pred_check
          %p427 = pneg %p130
        $region74: #{gcn_forward_fused.1} parent=63 // pred_check_branch
          %429 = sbr.rel (%p427) target = $region76
        $region75: #{gcn_forward_fused.1} parent=63 // pred_region
          %430 = dma.done %s423, 1024
        $region76: #{gcn_forward_fused.1} parent=63 // pred_fallthru
          _
        // Predicated region
        $region77: #{gcn_forward_fused.1} parent=63 // pred_check
          %p431 = pneg %p255
        $region78: #{gcn_forward_fused.1} parent=63 // pred_check_branch
          %433 = sbr.rel (%p431) target = $region80
        $region79: #{gcn_forward_fused.1} parent=63 // pred_region
          %434 = dma.done [#allocation7], 1024
        $region80: #{gcn_forward_fused.1} parent=63 // pred_fallthru
          _
        %p435 = pneg %p41
        %p436 = pneg %p38
        %p437 = pneg %p62
        %p438 = pneg %p59
        %p439 = pneg %p83
        %p440 = pneg %p80
        %p441 = pneg %p104
        %p442 = pneg %p101
        %s443 = sand.u32 %s25, 1
        %s444 = scalar_lea.sflag [#allocation4], %s443
        %s445 = sand.u32 %s117, 1
        %s446 = smul.addr %s445, 64
        %s447 = scalar_lea.vmem [#allocation8], %s446
        %p448 = pneg %p130
        %p449 = pneg %p127
        %p450 = scmp.lt.s32.totalorder %s25, 1
        %s451 = scalar_select %p450, %s25, 1
        %s452 = scalar_lea.vmem %s5, %s451
        %p453 = pneg %p156
        %p454 = pneg %p153
        %p455 = scmp.lt.s32.totalorder %s25, 1
        %s456 = scalar_select %p455, %s25, 1
        %s457 = scalar_lea.vmem %s6, %s456
        %p458 = pneg %p182
        %p459 = pneg %p179
        %p460 = scmp.lt.s32.totalorder %s25, 1
        %s461 = scalar_select %p460, %s25, 1
        %s462 = scalar_lea.vmem %s7, %s461
        %p463 = pneg %p208
        %p464 = pneg %p205
        %p465 = scmp.lt.s32.totalorder %s25, 1
        %s466 = scalar_select %p465, %s25, 1
        %s467 = scalar_lea.vmem %s8, %s466
        %p468 = pneg %p234
        %p469 = pneg %p231
        %p470 = pneg %p255
        %p471 = pneg %p252
        %p472 = pneg %p276
        %p473 = pneg %p273
        %p474 = pneg %p297
        %p475 = pneg %p294
        %p476 = scmp.lt.s32.totalorder %s25, 1
        %s477 = scalar_select %p476, %s25, 1
        %s478 = scalar_lea.vmem %s5, %s477
        %p479 = scmp.lt.s32.totalorder %s25, 1
        %s480 = scalar_select %p479, %s25, 1
        %s481 = scalar_lea.vmem %s6, %s480
        %p482 = scmp.lt.s32.totalorder %s25, 1
        %s483 = scalar_select %p482, %s25, 1
        %s484 = scalar_lea.vmem %s7, %s483
        %p485 = scmp.lt.s32.totalorder %s25, 1
        %s486 = scalar_select %p485, %s25, 1
        %s487 = scalar_lea.vmem %s8, %s486
        %p489 = scmp.eq.s32.totalorder %s25, 0
        // Predicated region
        $region81: #{gcn_forward_fused.1} parent=63 // pred_check
          %p490 = pneg %p489
        $region82: #{gcn_forward_fused.1} parent=63 // pred_check_branch
          %492 = sbr.rel (%p490) target = $region84
        $region83: #{gcn_forward_fused.1} parent=63 // pred_region
          %v493 = vld [vmem:[#allocation3] sm:$0xf]
          %v494 = vld [vmem:[#allocation3 + $0x4] sm:$0xf]
          %v495 = vld [vmem:[#allocation3 + $0x8] sm:$0xf]
          %v496 = vld [vmem:[#allocation3 + $0xc] sm:$0xf]
          %v497 = vld [vmem:[#allocation3 + $0x10] sm:$0xf]
          %v498 = vld [vmem:[#allocation3 + $0x14] sm:$0xf]
          %v499 = vld [vmem:[#allocation3 + $0x18] sm:$0xf]
          %v500 = vld [vmem:[#allocation3 + $0x1c] sm:$0xf]
          %v501 = vld [vmem:[#allocation3 + $0x20] sm:$0xf]
          %v502 = vld [vmem:[#allocation3 + $0x24] sm:$0xf]
          %v503 = vld [vmem:[#allocation3 + $0x28] sm:$0xf]
          %v504 = vld [vmem:[#allocation3 + $0x2c] sm:$0xf]
          %v505 = vld [vmem:[#allocation3 + $0x30] sm:$0xf]
          %v506 = vld [vmem:[#allocation3 + $0x34] sm:$0xf]
          %v507 = vld [vmem:[#allocation3 + $0x38] sm:$0xf]
          %v508 = vld [vmem:[#allocation3 + $0x3c] sm:$0xf]
          %509 = vst [vmem:[#allocation2] sm:$0xf] %v493
          %510 = vst [vmem:[#allocation2 + $0x4] sm:$0xf] %v494
          %511 = vst [vmem:[#allocation2 + $0x8] sm:$0xf] %v495
          %512 = vst [vmem:[#allocation2 + $0xc] sm:$0xf] %v496
          %513 = vst [vmem:[#allocation2 + $0x10] sm:$0xf] %v497
          %514 = vst [vmem:[#allocation2 + $0x14] sm:$0xf] %v498
          %515 = vst [vmem:[#allocation2 + $0x18] sm:$0xf] %v499
          %516 = vst [vmem:[#allocation2 + $0x1c] sm:$0xf] %v500
          %517 = vst [vmem:[#allocation2 + $0x20] sm:$0xf] %v501
          %518 = vst [vmem:[#allocation2 + $0x24] sm:$0xf] %v502
          %519 = vst [vmem:[#allocation2 + $0x28] sm:$0xf] %v503
          %520 = vst [vmem:[#allocation2 + $0x2c] sm:$0xf] %v504
          %521 = vst [vmem:[#allocation2 + $0x30] sm:$0xf] %v505
          %522 = vst [vmem:[#allocation2 + $0x34] sm:$0xf] %v506
          %523 = vst [vmem:[#allocation2 + $0x38] sm:$0xf] %v507
          %524 = vst [vmem:[#allocation2 + $0x3c] sm:$0xf] %v508
        $region84: #{gcn_forward_fused.1} parent=63 // pred_fallthru
          _
        %v525 = vld [vmem:[#allocation2] sm:$0xf]
        %v526 = vld [vmem:[#allocation2 + $0x4] sm:$0xf]
        %v527 = vld [vmem:[#allocation2 + $0x8] sm:$0xf]
        %v528 = vld [vmem:[#allocation2 + $0xc] sm:$0xf]
        %v529 = vld [vmem:[#allocation2 + $0x10] sm:$0xf]
        %v530 = vld [vmem:[#allocation2 + $0x14] sm:$0xf]
        %v531 = vld [vmem:[#allocation2 + $0x18] sm:$0xf]
        %v532 = vld [vmem:[#allocation2 + $0x1c] sm:$0xf]
        %v533 = vld [vmem:[#allocation2 + $0x20] sm:$0xf]
        %v534 = vld [vmem:[#allocation2 + $0x24] sm:$0xf]
        %v535 = vld [vmem:[#allocation2 + $0x28] sm:$0xf]
        %v536 = vld [vmem:[#allocation2 + $0x2c] sm:$0xf]
        %v537 = vld [vmem:[#allocation2 + $0x30] sm:$0xf]
        %v538 = vld [vmem:[#allocation2 + $0x34] sm:$0xf]
        %v539 = vld [vmem:[#allocation2 + $0x38] sm:$0xf]
        %v540 = vld [vmem:[#allocation2 + $0x3c] sm:$0xf]
        %v541 = vld [vmem:[%s0] sm:$0xf]
        %v542 = vld [vmem:[%s0 + $0x4] sm:$0xf]
        %v543 = vld [vmem:[%s0 + $0x8] sm:$0xf]
        %v544 = vld [vmem:[%s0 + $0xc] sm:$0xf]
        %v545 = vld [vmem:[%s0 + $0x10] sm:$0xf]
        %v546 = vld [vmem:[%s0 + $0x14] sm:$0xf]
        %v547 = vld [vmem:[%s0 + $0x18] sm:$0xf]
        %v548 = vld [vmem:[%s0 + $0x1c] sm:$0xf]
        %v549 = vld [vmem:[%s0 + $0x20] sm:$0xf]
        %v550 = vld [vmem:[%s0 + $0x24] sm:$0xf]
        %v551 = vld [vmem:[%s0 + $0x28] sm:$0xf]
        %v552 = vld [vmem:[%s0 + $0x2c] sm:$0xf]
        %v553 = vld [vmem:[%s0 + $0x30] sm:$0xf]
        %v554 = vld [vmem:[%s0 + $0x34] sm:$0xf]
        %v555 = vld [vmem:[%s0 + $0x38] sm:$0xf]
        %v556 = vld [vmem:[%s0 + $0x3c] sm:$0xf]
        %v557 = vld [vmem:[#allocation6] sm:$0xff]
        %v558 = vld [vmem:[%s3] sm:$0xf]
        %v559 = vld [vmem:[%s3 + $0x4] sm:$0xf]
        %v560 = vld [vmem:[%s3 + $0x8] sm:$0xf]
        %v561 = vld [vmem:[%s3 + $0xc] sm:$0xf]
        %v562 = vld [vmem:[%s3 + $0x10] sm:$0xf]
        %v563 = vld [vmem:[%s3 + $0x14] sm:$0xf]
        %v564 = vld [vmem:[%s3 + $0x18] sm:$0xf]
        %v565 = vld [vmem:[%s3 + $0x1c] sm:$0xf]
        %v566 = vld [vmem:[%s3 + $0x20] sm:$0xf]
        %v567 = vld [vmem:[%s3 + $0x24] sm:$0xf]
        %v568 = vld [vmem:[%s3 + $0x28] sm:$0xf]
        %v569 = vld [vmem:[%s3 + $0x2c] sm:$0xf]
        %v570 = vld [vmem:[%s3 + $0x30] sm:$0xf]
        %v571 = vld [vmem:[%s3 + $0x34] sm:$0xf]
        %v572 = vld [vmem:[%s3 + $0x38] sm:$0xf]
        %v573 = vld [vmem:[%s3 + $0x3c] sm:$0xf]
        %v574 = vld [vmem:[%s426] sm:$0xf]
        %v575 = vld [vmem:[%s426 + $0x4] sm:$0xf]
        %v576 = vld [vmem:[%s426 + $0x8] sm:$0xf]
        %v577 = vld [vmem:[%s426 + $0xc] sm:$0xf]
        %v578 = vld [vmem:[%s426 + $0x10] sm:$0xf]
        %v579 = vld [vmem:[%s426 + $0x14] sm:$0xf]
        %v580 = vld [vmem:[%s426 + $0x18] sm:$0xf]
        %v581 = vld [vmem:[%s426 + $0x1c] sm:$0xf]
        %v582 = vld [vmem:[%s426 + $0x20] sm:$0xf]
        %v583 = vld [vmem:[%s426 + $0x24] sm:$0xf]
        %v584 = vld [vmem:[%s426 + $0x28] sm:$0xf]
        %v585 = vld [vmem:[%s426 + $0x2c] sm:$0xf]
        %v586 = vld [vmem:[%s426 + $0x30] sm:$0xf]
        %v587 = vld [vmem:[%s426 + $0x34] sm:$0xf]
        %v588 = vld [vmem:[%s426 + $0x38] sm:$0xf]
        %v589 = vld [vmem:[%s426 + $0x3c] sm:$0xf]
        %v606 = vunpack.c.l.b16 %v525
        %v607 = vunpack.c.l.b16 %v526
        %v608 = vunpack.c.l.b16 %v527
        %v609 = vunpack.c.l.b16 %v528
        %v610 = vunpack.c.l.b16 %v529
        %v611 = vunpack.c.l.b16 %v530
        %v612 = vunpack.c.l.b16 %v531
        %v613 = vunpack.c.l.b16 %v532
        %v614 = vunpack.c.l.b16 %v533
        %v615 = vunpack.c.l.b16 %v534
        %v616 = vunpack.c.l.b16 %v535
        %v617 = vunpack.c.l.b16 %v536
        %v618 = vunpack.c.l.b16 %v537
        %v619 = vunpack.c.l.b16 %v538
        %v620 = vunpack.c.l.b16 %v539
        %v621 = vunpack.c.l.b16 %v540
        %v622 = vpack.c.b16 %v607, %v606
        %v623 = vpack.c.b16 %v609, %v608
        %v624 = vpack.c.b16 %v611, %v610
        %v625 = vpack.c.b16 %v613, %v612
        %v626 = vpack.c.b16 %v615, %v614
        %v627 = vpack.c.b16 %v617, %v616
        %v628 = vpack.c.b16 %v619, %v618
        %v629 = vpack.c.b16 %v621, %v620
        %v654 = vunpack.c.l.b16 %v574
        %v655 = vunpack.c.l.b16 %v575
        %v656 = vunpack.c.l.b16 %v576
        %v657 = vunpack.c.l.b16 %v577
        %v658 = vunpack.c.l.b16 %v578
        %v659 = vunpack.c.l.b16 %v579
        %v660 = vunpack.c.l.b16 %v580
        %v661 = vunpack.c.l.b16 %v581
        %v662 = vunpack.c.l.b16 %v582
        %v663 = vunpack.c.l.b16 %v583
        %v664 = vunpack.c.l.b16 %v584
        %v665 = vunpack.c.l.b16 %v585
        %v666 = vunpack.c.l.b16 %v586
        %v667 = vunpack.c.l.b16 %v587
        %v668 = vunpack.c.l.b16 %v588
        %v669 = vunpack.c.l.b16 %v589
        %v670 = vpack.c.b16 %v655, %v654
        %v671 = vpack.c.b16 %v657, %v656
        %v672 = vpack.c.b16 %v659, %v658
        %v673 = vpack.c.b16 %v661, %v660
        %v674 = vpack.c.b16 %v663, %v662
        %v675 = vpack.c.b16 %v665, %v664
        %v676 = vpack.c.b16 %v667, %v666
        %v677 = vpack.c.b16 %v669, %v668
        %686 = vmatprep.subr.bf16.mxu0 0
        %687 = vmatpush1.bf16.msra.mxu0 %v677
        %688 = vmatprep.subr.bf16.mxu0 0
        %689 = vmatpush1.bf16.msra.mxu0 %v676
        %690 = vmatprep.subr.bf16.mxu0 0
        %691 = vmatpush1.bf16.msra.mxu0 %v675
        %692 = vmatprep.subr.bf16.mxu0 0
        %693 = vmatpush1.bf16.msra.mxu0 %v674
        %694 = vmatprep.subr.bf16.mxu0 0
        %695 = vmatpush1.bf16.msra.mxu0 %v673
        %696 = vmatprep.subr.bf16.mxu0 0
        %697 = vmatpush1.bf16.msra.mxu0 %v672
        %698 = vmatprep.subr.bf16.mxu0 0
        %699 = vmatpush1.bf16.msra.mxu0 %v671
        %700 = vmatprep.subr.bf16.mxu0 0
        %701 = vmatpush1.bf16.msra.mxu0 %v670
        %702 = vmatprep.subr.bf16.mxu0 0
        %703 = vmatpush2.bf16.msra.mxu0 0
        %704 = vmatprep.subr.bf16.mxu0 0
        %705 = vmatpush2.bf16.msra.mxu0 0
        %706 = vmatprep.subr.bf16.mxu0 0
        %707 = vmatpush2.bf16.msra.mxu0 0
        %708 = vmatprep.subr.bf16.mxu0 0
        %709 = vmatpush2.bf16.msra.mxu0 0
        %710 = vmatprep.subr.bf16.mxu0 0
        %711 = vmatpush2.bf16.msra.mxu0 0
        %712 = vmatprep.subr.bf16.mxu0 0
        %713 = vmatpush2.bf16.msra.mxu0 0
        %714 = vmatprep.subr.bf16.mxu0 0
        %715 = vmatpush2.bf16.msra.mxu0 0
        %716 = vmatprep.subr.bf16.mxu0 0
        %717 = vmatpush2.bf16.msra.mxu0 0
        %718 = vmatprep.mubr.bf16.mxu0 0
        %719 = vmatmul.mubr.bf16.gmra.mxu0 %v622
        %v720 = vpop.f32.mrf.mxu0
        %v721 = vadd.f32 0.0, %v720
        %v722 = vpop.f32.mrf.mxu0
        %v723 = vpop.f32.mrf.mxu0
        %v724 = vadd.f32 0.0, %v723
        %v725 = vpop.f32.mrf.mxu0
        %726 = vmatprep.mubr.bf16.mxu0 0
        %727 = vmatmul.mubr.bf16.gmra.mxu0 %v623
        %v728 = vpop.f32.mrf.mxu0
        %v729 = vadd.f32 0.0, %v728
        %v730 = vpop.f32.mrf.mxu0
        %v731 = vpop.f32.mrf.mxu0
        %v732 = vadd.f32 0.0, %v731
        %v733 = vpop.f32.mrf.mxu0
        %734 = vmatprep.mubr.bf16.mxu0 0
        %735 = vmatmul.mubr.bf16.gmra.mxu0 %v624
        %v736 = vpop.f32.mrf.mxu0
        %v737 = vadd.f32 0.0, %v736
        %v738 = vpop.f32.mrf.mxu0
        %v739 = vpop.f32.mrf.mxu0
        %v740 = vadd.f32 0.0, %v739
        %v741 = vpop.f32.mrf.mxu0
        %742 = vmatprep.mubr.bf16.mxu0 0
        %743 = vmatmul.mubr.bf16.gmra.mxu0 %v625
        %v744 = vpop.f32.mrf.mxu0
        %v745 = vadd.f32 0.0, %v744
        %v746 = vpop.f32.mrf.mxu0
        %v747 = vpop.f32.mrf.mxu0
        %v748 = vadd.f32 0.0, %v747
        %v749 = vpop.f32.mrf.mxu0
        %750 = vmatprep.mubr.bf16.mxu0 0
        %751 = vmatmul.mubr.bf16.gmra.mxu0 %v626
        %v752 = vpop.f32.mrf.mxu0
        %v753 = vadd.f32 0.0, %v752
        %v754 = vpop.f32.mrf.mxu0
        %v755 = vpop.f32.mrf.mxu0
        %v756 = vadd.f32 0.0, %v755
        %v757 = vpop.f32.mrf.mxu0
        %758 = vmatprep.mubr.bf16.mxu0 0
        %759 = vmatmul.mubr.bf16.gmra.mxu0 %v627
        %v760 = vpop.f32.mrf.mxu0
        %v761 = vadd.f32 0.0, %v760
        %v762 = vpop.f32.mrf.mxu0
        %v763 = vpop.f32.mrf.mxu0
        %v764 = vadd.f32 0.0, %v763
        %v765 = vpop.f32.mrf.mxu0
        %766 = vmatprep.mubr.bf16.mxu0 0
        %767 = vmatmul.mubr.bf16.gmra.mxu0 %v628
        %v768 = vpop.f32.mrf.mxu0
        %v769 = vadd.f32 0.0, %v768
        %v770 = vpop.f32.mrf.mxu0
        %v771 = vpop.f32.mrf.mxu0
        %v772 = vadd.f32 0.0, %v771
        %v773 = vpop.f32.mrf.mxu0
        %774 = vmatprep.mubr.bf16.mxu0 0
        %775 = vmatmul.mubr.bf16.gmra.mxu0 %v629
        %v776 = vpop.f32.mrf.mxu0
        %v777 = vadd.f32 0.0, %v776
        %v778 = vpop.f32.mrf.mxu0
        %v779 = vpop.f32.mrf.mxu0
        %v780 = vadd.f32 0.0, %v779
        %v781 = vpop.f32.mrf.mxu0
        %782 = vdwg.mxu0
        %v783 = vpack.c.bf16 %v724, %v721
        %v784 = vpack.c.bf16 %v732, %v729
        %v785 = vpack.c.bf16 %v740, %v737
        %v786 = vpack.c.bf16 %v748, %v745
        %v787 = vpack.c.bf16 %v756, %v753
        %v788 = vpack.c.bf16 %v764, %v761
        %v789 = vpack.c.bf16 %v772, %v769
        %v790 = vpack.c.bf16 %v780, %v777
        %v791 = vld [vmem:[%s478] sm:$0x1]
        %v793 = vlaneseq
        %v794 = vshrl.u32 %v793, 7
        %v795 = vsub.s32 0, %v794
        %v796 = vrot.slane %v791, %v795
        %v814 = vunpack.c.l.b16 %v541
        %v815 = vunpack.c.l.b16 %v542
        %v816 = vunpack.c.l.b16 %v543
        %v817 = vunpack.c.l.b16 %v544
        %v818 = vunpack.c.l.b16 %v545
        %v819 = vunpack.c.l.b16 %v546
        %v820 = vunpack.c.l.b16 %v547
        %v821 = vunpack.c.l.b16 %v548
        %v822 = vunpack.c.l.b16 %v549
        %v823 = vunpack.c.l.b16 %v550
        %v824 = vunpack.c.l.b16 %v551
        %v825 = vunpack.c.l.b16 %v552
        %v826 = vunpack.c.l.b16 %v553
        %v827 = vunpack.c.l.b16 %v554
        %v828 = vunpack.c.l.b16 %v555
        %v829 = vunpack.c.l.b16 %v556
        %v830 = vpack.c.b16 %v815, %v814
        %v831 = vpack.c.b16 %v817, %v816
        %v832 = vpack.c.b16 %v819, %v818
        %v833 = vpack.c.b16 %v821, %v820
        %v834 = vpack.c.b16 %v823, %v822
        %v835 = vpack.c.b16 %v825, %v824
        %v836 = vpack.c.b16 %v827, %v826
        %v837 = vpack.c.b16 %v829, %v828
        %846 = vmatprep.subr.bf16.mxu0 0
        %847 = vmatpush1.bf16.msra.mxu0 %v790
        %848 = vmatprep.subr.bf16.mxu0 0
        %849 = vmatpush1.bf16.msra.mxu0 %v789
        %850 = vmatprep.subr.bf16.mxu0 0
        %851 = vmatpush1.bf16.msra.mxu0 %v788
        %852 = vmatprep.subr.bf16.mxu0 0
        %853 = vmatpush1.bf16.msra.mxu0 %v787
        %854 = vmatprep.subr.bf16.mxu0 0
        %855 = vmatpush1.bf16.msra.mxu0 %v786
        %856 = vmatprep.subr.bf16.mxu0 0
        %857 = vmatpush1.bf16.msra.mxu0 %v785
        %858 = vmatprep.subr.bf16.mxu0 0
        %859 = vmatpush1.bf16.msra.mxu0 %v784
        %860 = vmatprep.subr.bf16.mxu0 0
        %861 = vmatpush1.bf16.msra.mxu0 %v783
        %862 = vmatprep.subr.bf16.mxu0 0
        %863 = vmatpush2.bf16.msra.mxu0 0
        %864 = vmatprep.subr.bf16.mxu0 0
        %865 = vmatpush2.bf16.msra.mxu0 0
        %866 = vmatprep.subr.bf16.mxu0 0
        %867 = vmatpush2.bf16.msra.mxu0 0
        %868 = vmatprep.subr.bf16.mxu0 0
        %869 = vmatpush2.bf16.msra.mxu0 0
        %870 = vmatprep.subr.bf16.mxu0 0
        %871 = vmatpush2.bf16.msra.mxu0 0
        %872 = vmatprep.subr.bf16.mxu0 0
        %873 = vmatpush2.bf16.msra.mxu0 0
        %874 = vmatprep.subr.bf16.mxu0 0
        %875 = vmatpush2.bf16.msra.mxu0 0
        %876 = vmatprep.subr.bf16.mxu0 0
        %877 = vmatpush2.bf16.msra.mxu0 0
        %878 = vmatprep.mubr.bf16.mxu0 0
        %879 = vmatmul.mubr.bf16.gmra.mxu0 %v830
        %v880 = vpop.f32.mrf.mxu0
        %v881 = vadd.f32 %v796, %v880
        %v882 = vpop.f32.mrf.mxu0
        %v883 = vpop.f32.mrf.mxu0
        %v884 = vadd.f32 %v796, %v883
        %v885 = vpop.f32.mrf.mxu0
        %886 = vmatprep.mubr.bf16.mxu0 0
        %887 = vmatmul.mubr.bf16.gmra.mxu0 %v831
        %v888 = vpop.f32.mrf.mxu0
        %v889 = vadd.f32 %v796, %v888
        %v890 = vpop.f32.mrf.mxu0
        %v891 = vpop.f32.mrf.mxu0
        %v892 = vadd.f32 %v796, %v891
        %v893 = vpop.f32.mrf.mxu0
        %894 = vmatprep.mubr.bf16.mxu0 0
        %895 = vmatmul.mubr.bf16.gmra.mxu0 %v832
        %v896 = vpop.f32.mrf.mxu0
        %v897 = vadd.f32 %v796, %v896
        %v898 = vpop.f32.mrf.mxu0
        %v899 = vpop.f32.mrf.mxu0
        %v900 = vadd.f32 %v796, %v899
        %v901 = vpop.f32.mrf.mxu0
        %902 = vmatprep.mubr.bf16.mxu0 0
        %903 = vmatmul.mubr.bf16.gmra.mxu0 %v833
        %v904 = vpop.f32.mrf.mxu0
        %v905 = vadd.f32 %v796, %v904
        %v906 = vpop.f32.mrf.mxu0
        %v907 = vpop.f32.mrf.mxu0
        %v908 = vadd.f32 %v796, %v907
        %v909 = vpop.f32.mrf.mxu0
        %910 = vmatprep.mubr.bf16.mxu0 0
        %911 = vmatmul.mubr.bf16.gmra.mxu0 %v834
        %v912 = vpop.f32.mrf.mxu0
        %v913 = vadd.f32 %v796, %v912
        %v914 = vpop.f32.mrf.mxu0
        %v915 = vpop.f32.mrf.mxu0
        %v916 = vadd.f32 %v796, %v915
        %v917 = vpop.f32.mrf.mxu0
        %918 = vmatprep.mubr.bf16.mxu0 0
        %919 = vmatmul.mubr.bf16.gmra.mxu0 %v835
        %v920 = vpop.f32.mrf.mxu0
        %v921 = vadd.f32 %v796, %v920
        %v922 = vpop.f32.mrf.mxu0
        %v923 = vpop.f32.mrf.mxu0
        %v924 = vadd.f32 %v796, %v923
        %v925 = vpop.f32.mrf.mxu0
        %926 = vmatprep.mubr.bf16.mxu0 0
        %927 = vmatmul.mubr.bf16.gmra.mxu0 %v836
        %v928 = vpop.f32.mrf.mxu0
        %v929 = vadd.f32 %v796, %v928
        %v930 = vpop.f32.mrf.mxu0
        %v931 = vpop.f32.mrf.mxu0
        %v932 = vadd.f32 %v796, %v931
        %v933 = vpop.f32.mrf.mxu0
        %934 = vmatprep.mubr.bf16.mxu0 0
        %935 = vmatmul.mubr.bf16.gmra.mxu0 %v837
        %v936 = vpop.f32.mrf.mxu0
        %v937 = vadd.f32 %v796, %v936
        %v938 = vpop.f32.mrf.mxu0
        %v939 = vpop.f32.mrf.mxu0
        %v940 = vadd.f32 %v796, %v939
        %v941 = vpop.f32.mrf.mxu0
        %942 = vdwg.mxu0
        %v943 = vld [vmem:[%s481] sm:$0x1]
        %v944 = vld [vmem:[%s484] sm:$0x1]
        %v945 = vld [vmem:[%s487] sm:$0x1]
        %946 = vmatprep.subr.mxu0 0.0
        %947 = vmatpush1.msra.mxu0 %v940
        %948 = vmatprep.subr.mxu0 0.0
        %949 = vmatpush1.msra.mxu0 %v937
        %950 = vmatprep.subr.mxu0 0.0
        %951 = vmatpush1.msra.mxu0 %v932
        %952 = vmatprep.subr.mxu0 0.0
        %953 = vmatpush1.msra.mxu0 %v929
        %954 = vmatprep.subr.mxu0 0.0
        %955 = vmatpush1.msra.mxu0 %v924
        %956 = vmatprep.subr.mxu0 0.0
        %957 = vmatpush1.msra.mxu0 %v921
        %958 = vmatprep.subr.mxu0 0.0
        %959 = vmatpush1.msra.mxu0 %v916
        %960 = vmatprep.subr.mxu0 0.0
        %961 = vmatpush1.msra.mxu0 %v913
        %962 = vmatprep.subr.mxu0 0.0
        %963 = vmatpush1.msra.mxu0 %v908
        %964 = vmatprep.subr.mxu0 0.0
        %965 = vmatpush1.msra.mxu0 %v905
        %966 = vmatprep.subr.mxu0 0.0
        %967 = vmatpush1.msra.mxu0 %v900
        %968 = vmatprep.subr.mxu0 0.0
        %969 = vmatpush1.msra.mxu0 %v897
        %970 = vmatprep.subr.mxu0 0.0
        %971 = vmatpush1.msra.mxu0 %v892
        %972 = vmatprep.subr.mxu0 0.0
        %973 = vmatpush1.msra.mxu0 %v889
        %974 = vmatprep.subr.mxu0 0.0
        %975 = vmatpush1.msra.mxu0 %v884
        %976 = vmatprep.subr.mxu0 0.0
        %977 = vmatpush1.msra.mxu0 %v881
        %978 = vmatprep.subr.mxu0 0.0
        %979 = vmatpush2.msra.mxu0 0.0
        %980 = vmatprep.subr.mxu0 0.0
        %981 = vmatpush2.msra.mxu0 0.0
        %982 = vmatprep.subr.mxu0 0.0
        %983 = vmatpush2.msra.mxu0 0.0
        %984 = vmatprep.subr.mxu0 0.0
        %985 = vmatpush2.msra.mxu0 0.0
        %986 = vmatprep.subr.mxu0 0.0
        %987 = vmatpush2.msra.mxu0 0.0
        %988 = vmatprep.subr.mxu0 0.0
        %989 = vmatpush2.msra.mxu0 0.0
        %990 = vmatprep.subr.mxu0 0.0
        %991 = vmatpush2.msra.mxu0 0.0
        %992 = vmatprep.subr.mxu0 0.0
        %993 = vmatpush2.msra.mxu0 0.0
        %994 = vmatprep.subr.mxu0 0.0
        %995 = vmatpush2.msra.mxu0 0.0
        %996 = vmatprep.subr.mxu0 0.0
        %997 = vmatpush2.msra.mxu0 0.0
        %998 = vmatprep.subr.mxu0 0.0
        %999 = vmatpush2.msra.mxu0 0.0
        %1000 = vmatprep.subr.mxu0 0.0
        %1001 = vmatpush2.msra.mxu0 0.0
        %1002 = vmatprep.subr.mxu0 0.0
        %1003 = vmatpush2.msra.mxu0 0.0
        %1004 = vmatprep.subr.mxu0 0.0
        %1005 = vmatpush2.msra.mxu0 0.0
        %1006 = vmatprep.subr.mxu0 0.0
        %1007 = vmatpush2.msra.mxu0 0.0
        %1008 = vmatprep.subr.mxu0 0.0
        %1009 = vmatpush2.msra.mxu0 0.0
        %1010 = vmatprep.mubr.f32.mxu0 0.0
        %1011 = vmatmul.mubr.f32.gmra.mxu0 %v557
        %v1012 = vpop.f32.mrf.mxu0
        %v1013 = vadd.f32 0.0, %v1012
        %v1014 = vpop.f32.mrf.mxu0
        %1015 = vdwg.mxu0
        %v1016 = vpack.c.bf16 %v1013, %v1013
        %v1033 = vunpack.c.l.b16 %v558
        %v1034 = vunpack.c.l.b16 %v559
        %v1035 = vunpack.c.l.b16 %v560
        %v1036 = vunpack.c.l.b16 %v561
        %v1037 = vunpack.c.l.b16 %v562
        %v1038 = vunpack.c.l.b16 %v563
        %v1039 = vunpack.c.l.b16 %v564
        %v1040 = vunpack.c.l.b16 %v565
        %v1041 = vunpack.c.l.b16 %v566
        %v1042 = vunpack.c.l.b16 %v567
        %v1043 = vunpack.c.l.b16 %v568
        %v1044 = vunpack.c.l.b16 %v569
        %v1045 = vunpack.c.l.b16 %v570
        %v1046 = vunpack.c.l.b16 %v571
        %v1047 = vunpack.c.l.b16 %v572
        %v1048 = vunpack.c.l.b16 %v573
        %v1049 = vpack.c.b16 %v1034, %v1033
        %v1050 = vpack.c.b16 %v1036, %v1035
        %v1051 = vpack.c.b16 %v1038, %v1037
        %v1052 = vpack.c.b16 %v1040, %v1039
        %v1053 = vpack.c.b16 %v1042, %v1041
        %v1054 = vpack.c.b16 %v1044, %v1043
        %v1055 = vpack.c.b16 %v1046, %v1045
        %v1056 = vpack.c.b16 %v1048, %v1047
        %vm1057 = vcmask 64512
        %v1059 = vsel %vm1057, %v1049, 0
        %v1062 = vsel %vm1057, %v1050, 0
        %v1065 = vsel %vm1057, %v1051, 0
        %v1068 = vsel %vm1057, %v1052, 0
        %v1071 = vsel %vm1057, %v1053, 0
        %v1074 = vsel %vm1057, %v1054, 0
        %v1077 = vsel %vm1057, %v1055, 0
        %v1080 = vsel %vm1057, %v1056, 0
        %vm1082 = vcmask 1043456
        %v1084 = vsel %vm1082, %v1016, 0
        %1086 = vmatprep.subr.bf16.mxu0 0
        %1087 = vmatpush1.bf16.msra.mxu0 0
        %1088 = vmatprep.subr.bf16.mxu0 0
        %1089 = vmatpush1.bf16.msra.mxu0 0
        %1090 = vmatprep.subr.bf16.mxu0 0
        %1091 = vmatpush1.bf16.msra.mxu0 0
        %1092 = vmatprep.subr.bf16.mxu0 0
        %1093 = vmatpush1.bf16.msra.mxu0 0
        %1094 = vmatprep.subr.bf16.mxu0 0
        %1095 = vmatpush1.bf16.msra.mxu0 0
        %1096 = vmatprep.subr.bf16.mxu0 0
        %1097 = vmatpush1.bf16.msra.mxu0 0
        %1098 = vmatprep.subr.bf16.mxu0 0
        %1099 = vmatpush1.bf16.msra.mxu0 0
        %1100 = vmatprep.subr.bf16.mxu0 0
        %1101 = vmatpush1.bf16.msra.mxu0 %v1084
        %1102 = vmatprep.subr.bf16.mxu0 0
        %1103 = vmatpush2.bf16.msra.mxu0 0
        %1104 = vmatprep.subr.bf16.mxu0 0
        %1105 = vmatpush2.bf16.msra.mxu0 0
        %1106 = vmatprep.subr.bf16.mxu0 0
        %1107 = vmatpush2.bf16.msra.mxu0 0
        %1108 = vmatprep.subr.bf16.mxu0 0
        %1109 = vmatpush2.bf16.msra.mxu0 0
        %1110 = vmatprep.subr.bf16.mxu0 0
        %1111 = vmatpush2.bf16.msra.mxu0 0
        %1112 = vmatprep.subr.bf16.mxu0 0
        %1113 = vmatpush2.bf16.msra.mxu0 0
        %1114 = vmatprep.subr.bf16.mxu0 0
        %1115 = vmatpush2.bf16.msra.mxu0 0
        %1116 = vmatprep.subr.bf16.mxu0 0
        %1117 = vmatpush2.bf16.msra.mxu0 0
        %1118 = vmatprep.mubr.bf16.mxu0 0
        %1119 = vmatmul.mubr.bf16.gmra.mxu0 %v1059
        %v1120 = vpop.f32.mrf.mxu0
        %v1121 = vadd.f32 0.0, %v1120
        %v1122 = vpop.f32.mrf.mxu0
        %v1123 = vpop.f32.mrf.mxu0
        %v1124 = vadd.f32 0.0, %v1123
        %v1125 = vpop.f32.mrf.mxu0
        %1126 = vmatprep.mubr.bf16.mxu0 0
        %1127 = vmatmul.mubr.bf16.gmra.mxu0 %v1062
        %v1128 = vpop.f32.mrf.mxu0
        %v1129 = vadd.f32 0.0, %v1128
        %v1130 = vpop.f32.mrf.mxu0
        %v1131 = vpop.f32.mrf.mxu0
        %v1132 = vadd.f32 0.0, %v1131
        %v1133 = vpop.f32.mrf.mxu0
        %1134 = vmatprep.mubr.bf16.mxu0 0
        %1135 = vmatmul.mubr.bf16.gmra.mxu0 %v1065
        %v1136 = vpop.f32.mrf.mxu0
        %v1137 = vadd.f32 0.0, %v1136
        %v1138 = vpop.f32.mrf.mxu0
        %v1139 = vpop.f32.mrf.mxu0
        %v1140 = vadd.f32 0.0, %v1139
        %v1141 = vpop.f32.mrf.mxu0
        %1142 = vmatprep.mubr.bf16.mxu0 0
        %1143 = vmatmul.mubr.bf16.gmra.mxu0 %v1068
        %v1144 = vpop.f32.mrf.mxu0
        %v1145 = vadd.f32 0.0, %v1144
        %v1146 = vpop.f32.mrf.mxu0
        %v1147 = vpop.f32.mrf.mxu0
        %v1148 = vadd.f32 0.0, %v1147
        %v1149 = vpop.f32.mrf.mxu0
        %1150 = vmatprep.mubr.bf16.mxu0 0
        %1151 = vmatmul.mubr.bf16.gmra.mxu0 %v1071
        %v1152 = vpop.f32.mrf.mxu0
        %v1153 = vadd.f32 0.0, %v1152
        %v1154 = vpop.f32.mrf.mxu0
        %v1155 = vpop.f32.mrf.mxu0
        %v1156 = vadd.f32 0.0, %v1155
        %v1157 = vpop.f32.mrf.mxu0
        %1158 = vmatprep.mubr.bf16.mxu0 0
        %1159 = vmatmul.mubr.bf16.gmra.mxu0 %v1074
        %v1160 = vpop.f32.mrf.mxu0
        %v1161 = vadd.f32 0.0, %v1160
        %v1162 = vpop.f32.mrf.mxu0
        %v1163 = vpop.f32.mrf.mxu0
        %v1164 = vadd.f32 0.0, %v1163
        %v1165 = vpop.f32.mrf.mxu0
        %1166 = vmatprep.mubr.bf16.mxu0 0
        %1167 = vmatmul.mubr.bf16.gmra.mxu0 %v1077
        %v1168 = vpop.f32.mrf.mxu0
        %v1169 = vadd.f32 0.0, %v1168
        %v1170 = vpop.f32.mrf.mxu0
        %v1171 = vpop.f32.mrf.mxu0
        %v1172 = vadd.f32 0.0, %v1171
        %v1173 = vpop.f32.mrf.mxu0
        %1174 = vmatprep.mubr.bf16.mxu0 0
        %1175 = vmatmul.mubr.bf16.gmra.mxu0 %v1080
        %v1176 = vpop.f32.mrf.mxu0
        %v1177 = vadd.f32 0.0, %v1176
        %v1178 = vpop.f32.mrf.mxu0
        %v1179 = vpop.f32.mrf.mxu0
        %v1180 = vadd.f32 0.0, %v1179
        %v1181 = vpop.f32.mrf.mxu0
        %1182 = vdwg.mxu0
        %v1184 = vlaneseq
        %v1185 = vshrl.u32 %v1184, 7
        %v1186 = vsub.s32 0, %v1185
        %v1187 = vrot.slane %v943, %v1186
        %v1189 = vmul.f32 %v1187, %v1121
        %v1190 = vmul.f32 %v1187, %v1124
        %v1191 = vmul.f32 %v1187, %v1129
        %v1192 = vmul.f32 %v1187, %v1132
        %v1193 = vmul.f32 %v1187, %v1137
        %v1194 = vmul.f32 %v1187, %v1140
        %v1195 = vmul.f32 %v1187, %v1145
        %v1196 = vmul.f32 %v1187, %v1148
        %v1197 = vmul.f32 %v1187, %v1153
        %v1198 = vmul.f32 %v1187, %v1156
        %v1199 = vmul.f32 %v1187, %v1161
        %v1200 = vmul.f32 %v1187, %v1164
        %v1201 = vmul.f32 %v1187, %v1169
        %v1202 = vmul.f32 %v1187, %v1172
        %v1203 = vmul.f32 %v1187, %v1177
        %v1204 = vmul.f32 %v1187, %v1180
        %v1205 = vsub.f32 %v881, %v1189
        %v1206 = vsub.f32 %v884, %v1190
        %v1207 = vsub.f32 %v889, %v1191
        %v1208 = vsub.f32 %v892, %v1192
        %v1209 = vsub.f32 %v897, %v1193
        %v1210 = vsub.f32 %v900, %v1194
        %v1211 = vsub.f32 %v905, %v1195
        %v1212 = vsub.f32 %v908, %v1196
        %v1213 = vsub.f32 %v913, %v1197
        %v1214 = vsub.f32 %v916, %v1198
        %v1215 = vsub.f32 %v921, %v1199
        %v1216 = vsub.f32 %v924, %v1200
        %v1217 = vsub.f32 %v929, %v1201
        %v1218 = vsub.f32 %v932, %v1202
        %v1219 = vsub.f32 %v937, %v1203
        %v1220 = vsub.f32 %v940, %v1204
        %v1221 = vmul.f32 %v1205, %v1205
        %v1222 = vmul.f32 %v1206, %v1206
        %v1223 = vmul.f32 %v1207, %v1207
        %v1224 = vmul.f32 %v1208, %v1208
        %v1225 = vmul.f32 %v1209, %v1209
        %v1226 = vmul.f32 %v1210, %v1210
        %v1227 = vmul.f32 %v1211, %v1211
        %v1228 = vmul.f32 %v1212, %v1212
        %v1229 = vmul.f32 %v1213, %v1213
        %v1230 = vmul.f32 %v1214, %v1214
        %v1231 = vmul.f32 %v1215, %v1215
        %v1232 = vmul.f32 %v1216, %v1216
        %v1233 = vmul.f32 %v1217, %v1217
        %v1234 = vmul.f32 %v1218, %v1218
        %v1235 = vmul.f32 %v1219, %v1219
        %v1236 = vmul.f32 %v1220, %v1220
        %1237 = vmatprep.subr.mxu0 0.0
        %1238 = vmatpush1.msra.mxu0 %v1236
        %1239 = vmatprep.subr.mxu0 0.0
        %1240 = vmatpush1.msra.mxu0 %v1235
        %1241 = vmatprep.subr.mxu0 0.0
        %1242 = vmatpush1.msra.mxu0 %v1234
        %1243 = vmatprep.subr.mxu0 0.0
        %1244 = vmatpush1.msra.mxu0 %v1233
        %1245 = vmatprep.subr.mxu0 0.0
        %1246 = vmatpush1.msra.mxu0 %v1232
        %1247 = vmatprep.subr.mxu0 0.0
        %1248 = vmatpush1.msra.mxu0 %v1231
        %1249 = vmatprep.subr.mxu0 0.0
        %1250 = vmatpush1.msra.mxu0 %v1230
        %1251 = vmatprep.subr.mxu0 0.0
        %1252 = vmatpush1.msra.mxu0 %v1229
        %1253 = vmatprep.subr.mxu0 0.0
        %1254 = vmatpush1.msra.mxu0 %v1228
        %1255 = vmatprep.subr.mxu0 0.0
        %1256 = vmatpush1.msra.mxu0 %v1227
        %1257 = vmatprep.subr.mxu0 0.0
        %1258 = vmatpush1.msra.mxu0 %v1226
        %1259 = vmatprep.subr.mxu0 0.0
        %1260 = vmatpush1.msra.mxu0 %v1225
        %1261 = vmatprep.subr.mxu0 0.0
        %1262 = vmatpush1.msra.mxu0 %v1224
        %1263 = vmatprep.subr.mxu0 0.0
        %1264 = vmatpush1.msra.mxu0 %v1223
        %1265 = vmatprep.subr.mxu0 0.0
        %1266 = vmatpush1.msra.mxu0 %v1222
        %1267 = vmatprep.subr.mxu0 0.0
        %1268 = vmatpush1.msra.mxu0 %v1221
        %1269 = vmatprep.subr.mxu0 0.0
        %1270 = vmatpush2.msra.mxu0 0.0
        %1271 = vmatprep.subr.mxu0 0.0
        %1272 = vmatpush2.msra.mxu0 0.0
        %1273 = vmatprep.subr.mxu0 0.0
        %1274 = vmatpush2.msra.mxu0 0.0
        %1275 = vmatprep.subr.mxu0 0.0
        %1276 = vmatpush2.msra.mxu0 0.0
        %1277 = vmatprep.subr.mxu0 0.0
        %1278 = vmatpush2.msra.mxu0 0.0
        %1279 = vmatprep.subr.mxu0 0.0
        %1280 = vmatpush2.msra.mxu0 0.0
        %1281 = vmatprep.subr.mxu0 0.0
        %1282 = vmatpush2.msra.mxu0 0.0
        %1283 = vmatprep.subr.mxu0 0.0
        %1284 = vmatpush2.msra.mxu0 0.0
        %1285 = vmatprep.subr.mxu0 0.0
        %1286 = vmatpush2.msra.mxu0 0.0
        %1287 = vmatprep.subr.mxu0 0.0
        %1288 = vmatpush2.msra.mxu0 0.0
        %1289 = vmatprep.subr.mxu0 0.0
        %1290 = vmatpush2.msra.mxu0 0.0
        %1291 = vmatprep.subr.mxu0 0.0
        %1292 = vmatpush2.msra.mxu0 0.0
        %1293 = vmatprep.subr.mxu0 0.0
        %1294 = vmatpush2.msra.mxu0 0.0
        %1295 = vmatprep.subr.mxu0 0.0
        %1296 = vmatpush2.msra.mxu0 0.0
        %1297 = vmatprep.subr.mxu0 0.0
        %1298 = vmatpush2.msra.mxu0 0.0
        %1299 = vmatprep.subr.mxu0 0.0
        %1300 = vmatpush2.msra.mxu0 0.0
        %1301 = vmatprep.mubr.f32.mxu0 0.0
        %1302 = vmatmul.mubr.f32.gmra.mxu0 %v557
        %v1303 = vpop.f32.mrf.mxu0
        %v1304 = vadd.f32 1e-05, %v1303
        %v1305 = vpop.f32.mrf.mxu0
        %1306 = vdwg.mxu0
        %v1307 = vrsqrt.pop %v1304
        %v1309 = vlaneseq
        %v1310 = vshrl.u32 %v1309, 7
        %v1311 = vsub.s32 0, %v1310
        %v1312 = vrot.slane %v944, %v1311
        %v1314 = vmul.f32 %v1312, %v1307
        %v1315 = vpack.c.bf16 %v1314, %v1314
        %v1317 = vsel %vm1082, %v1315, 0
        %1319 = vmatprep.subr.bf16.mxu0 0
        %1320 = vmatpush1.bf16.msra.mxu0 0
        %1321 = vmatprep.subr.bf16.mxu0 0
        %1322 = vmatpush1.bf16.msra.mxu0 0
        %1323 = vmatprep.subr.bf16.mxu0 0
        %1324 = vmatpush1.bf16.msra.mxu0 0
        %1325 = vmatprep.subr.bf16.mxu0 0
        %1326 = vmatpush1.bf16.msra.mxu0 0
        %1327 = vmatprep.subr.bf16.mxu0 0
        %1328 = vmatpush1.bf16.msra.mxu0 0
        %1329 = vmatprep.subr.bf16.mxu0 0
        %1330 = vmatpush1.bf16.msra.mxu0 0
        %1331 = vmatprep.subr.bf16.mxu0 0
        %1332 = vmatpush1.bf16.msra.mxu0 0
        %1333 = vmatprep.subr.bf16.mxu0 0
        %1334 = vmatpush1.bf16.msra.mxu0 %v1317
        %1335 = vmatprep.subr.bf16.mxu0 0
        %1336 = vmatpush2.bf16.msra.mxu0 0
        %1337 = vmatprep.subr.bf16.mxu0 0
        %1338 = vmatpush2.bf16.msra.mxu0 0
        %1339 = vmatprep.subr.bf16.mxu0 0
        %1340 = vmatpush2.bf16.msra.mxu0 0
        %1341 = vmatprep.subr.bf16.mxu0 0
        %1342 = vmatpush2.bf16.msra.mxu0 0
        %1343 = vmatprep.subr.bf16.mxu0 0
        %1344 = vmatpush2.bf16.msra.mxu0 0
        %1345 = vmatprep.subr.bf16.mxu0 0
        %1346 = vmatpush2.bf16.msra.mxu0 0
        %1347 = vmatprep.subr.bf16.mxu0 0
        %1348 = vmatpush2.bf16.msra.mxu0 0
        %1349 = vmatprep.subr.bf16.mxu0 0
        %1350 = vmatpush2.bf16.msra.mxu0 0
        %1351 = vmatprep.mubr.bf16.mxu0 0
        %1352 = vmatmul.mubr.bf16.gmra.mxu0 %v1059
        %v1353 = vpop.f32.mrf.mxu0
        %v1354 = vadd.f32 0.0, %v1353
        %v1355 = vpop.f32.mrf.mxu0
        %v1356 = vpop.f32.mrf.mxu0
        %v1357 = vadd.f32 0.0, %v1356
        %v1358 = vpop.f32.mrf.mxu0
        %1359 = vmatprep.mubr.bf16.mxu0 0
        %1360 = vmatmul.mubr.bf16.gmra.mxu0 %v1062
        %v1361 = vpop.f32.mrf.mxu0
        %v1362 = vadd.f32 0.0, %v1361
        %v1363 = vpop.f32.mrf.mxu0
        %v1364 = vpop.f32.mrf.mxu0
        %v1365 = vadd.f32 0.0, %v1364
        %v1366 = vpop.f32.mrf.mxu0
        %1367 = vmatprep.mubr.bf16.mxu0 0
        %1368 = vmatmul.mubr.bf16.gmra.mxu0 %v1065
        %v1369 = vpop.f32.mrf.mxu0
        %v1370 = vadd.f32 0.0, %v1369
        %v1371 = vpop.f32.mrf.mxu0
        %v1372 = vpop.f32.mrf.mxu0
        %v1373 = vadd.f32 0.0, %v1372
        %v1374 = vpop.f32.mrf.mxu0
        %1375 = vmatprep.mubr.bf16.mxu0 0
        %1376 = vmatmul.mubr.bf16.gmra.mxu0 %v1068
        %v1377 = vpop.f32.mrf.mxu0
        %v1378 = vadd.f32 0.0, %v1377
        %v1379 = vpop.f32.mrf.mxu0
        %v1380 = vpop.f32.mrf.mxu0
        %v1381 = vadd.f32 0.0, %v1380
        %v1382 = vpop.f32.mrf.mxu0
        %1383 = vmatprep.mubr.bf16.mxu0 0
        %1384 = vmatmul.mubr.bf16.gmra.mxu0 %v1071
        %v1385 = vpop.f32.mrf.mxu0
        %v1386 = vadd.f32 0.0, %v1385
        %v1387 = vpop.f32.mrf.mxu0
        %v1388 = vpop.f32.mrf.mxu0
        %v1389 = vadd.f32 0.0, %v1388
        %v1390 = vpop.f32.mrf.mxu0
        %1391 = vmatprep.mubr.bf16.mxu0 0
        %1392 = vmatmul.mubr.bf16.gmra.mxu0 %v1074
        %v1393 = vpop.f32.mrf.mxu0
        %v1394 = vadd.f32 0.0, %v1393
        %v1395 = vpop.f32.mrf.mxu0
        %v1396 = vpop.f32.mrf.mxu0
        %v1397 = vadd.f32 0.0, %v1396
        %v1398 = vpop.f32.mrf.mxu0
        %1399 = vmatprep.mubr.bf16.mxu0 0
        %1400 = vmatmul.mubr.bf16.gmra.mxu0 %v1077
        %v1401 = vpop.f32.mrf.mxu0
        %v1402 = vadd.f32 0.0, %v1401
        %v1403 = vpop.f32.mrf.mxu0
        %v1404 = vpop.f32.mrf.mxu0
        %v1405 = vadd.f32 0.0, %v1404
        %v1406 = vpop.f32.mrf.mxu0
        %1407 = vmatprep.mubr.bf16.mxu0 0
        %1408 = vmatmul.mubr.bf16.gmra.mxu0 %v1080
        %v1409 = vpop.f32.mrf.mxu0
        %v1410 = vadd.f32 0.0, %v1409
        %v1411 = vpop.f32.mrf.mxu0
        %v1412 = vpop.f32.mrf.mxu0
        %v1413 = vadd.f32 0.0, %v1412
        %v1414 = vpop.f32.mrf.mxu0
        %1415 = vdwg.mxu0
        %v1416 = vmul.f32 %v1354, %v1205
        %v1417 = vmul.f32 %v1357, %v1206
        %v1418 = vmul.f32 %v1362, %v1207
        %v1419 = vmul.f32 %v1365, %v1208
        %v1420 = vmul.f32 %v1370, %v1209
        %v1421 = vmul.f32 %v1373, %v1210
        %v1422 = vmul.f32 %v1378, %v1211
        %v1423 = vmul.f32 %v1381, %v1212
        %v1424 = vmul.f32 %v1386, %v1213
        %v1425 = vmul.f32 %v1389, %v1214
        %v1426 = vmul.f32 %v1394, %v1215
        %v1427 = vmul.f32 %v1397, %v1216
        %v1428 = vmul.f32 %v1402, %v1217
        %v1429 = vmul.f32 %v1405, %v1218
        %v1430 = vmul.f32 %v1410, %v1219
        %v1431 = vmul.f32 %v1413, %v1220
        %v1433 = vlaneseq
        %v1434 = vshrl.u32 %v1433, 7
        %v1435 = vsub.s32 0, %v1434
        %v1436 = vrot.slane %v945, %v1435
        %v1438 = vadd.f32 %v1416, %v1436
        %v1439 = vadd.f32 %v1417, %v1436
        %v1440 = vadd.f32 %v1418, %v1436
        %v1441 = vadd.f32 %v1419, %v1436
        %v1442 = vadd.f32 %v1420, %v1436
        %v1443 = vadd.f32 %v1421, %v1436
        %v1444 = vadd.f32 %v1422, %v1436
        %v1445 = vadd.f32 %v1423, %v1436
        %v1446 = vadd.f32 %v1424, %v1436
        %v1447 = vadd.f32 %v1425, %v1436
        %v1448 = vadd.f32 %v1426, %v1436
        %v1449 = vadd.f32 %v1427, %v1436
        %v1450 = vadd.f32 %v1428, %v1436
        %v1451 = vadd.f32 %v1429, %v1436
        %v1452 = vadd.f32 %v1430, %v1436
        %v1453 = vadd.f32 %v1431, %v1436
        %v1454 = vmax.f32 %v1438, 0.0
        %v1455 = vmax.f32 %v1439, 0.0
        %v1456 = vmax.f32 %v1440, 0.0
        %v1457 = vmax.f32 %v1441, 0.0
        %v1458 = vmax.f32 %v1442, 0.0
        %v1459 = vmax.f32 %v1443, 0.0
        %v1460 = vmax.f32 %v1444, 0.0
        %v1461 = vmax.f32 %v1445, 0.0
        %v1462 = vmax.f32 %v1446, 0.0
        %v1463 = vmax.f32 %v1447, 0.0
        %v1464 = vmax.f32 %v1448, 0.0
        %v1465 = vmax.f32 %v1449, 0.0
        %v1466 = vmax.f32 %v1450, 0.0
        %v1467 = vmax.f32 %v1451, 0.0
        %v1468 = vmax.f32 %v1452, 0.0
        %v1469 = vmax.f32 %v1453, 0.0
        %v1470 = vpack.c.bf16 %v1455, %v1454
        %v1471 = vpack.c.bf16 %v1457, %v1456
        %v1472 = vpack.c.bf16 %v1459, %v1458
        %v1473 = vpack.c.bf16 %v1461, %v1460
        %v1474 = vpack.c.bf16 %v1463, %v1462
        %v1475 = vpack.c.bf16 %v1465, %v1464
        %v1476 = vpack.c.bf16 %v1467, %v1466
        %v1477 = vpack.c.bf16 %v1469, %v1468
        %v1486 = vunpack.c.l.b16 %v1470
        %v1487 = vunpack.c.h.b16 %v1470
        %v1488 = vunpack.c.l.b16 %v1471
        %v1489 = vunpack.c.h.b16 %v1471
        %v1490 = vunpack.c.l.b16 %v1472
        %v1491 = vunpack.c.h.b16 %v1472
        %v1492 = vunpack.c.l.b16 %v1473
        %v1493 = vunpack.c.h.b16 %v1473
        %v1494 = vunpack.c.l.b16 %v1474
        %v1495 = vunpack.c.h.b16 %v1474
        %v1496 = vunpack.c.l.b16 %v1475
        %v1497 = vunpack.c.h.b16 %v1475
        %v1498 = vunpack.c.l.b16 %v1476
        %v1499 = vunpack.c.h.b16 %v1476
        %v1500 = vunpack.c.l.b16 %v1477
        %v1501 = vunpack.c.h.b16 %v1477
        %v1502 = vpack.c.b16 %v1486, %v1486
        %v1503 = vpack.c.b16 %v1487, %v1487
        %v1504 = vpack.c.b16 %v1488, %v1488
        %v1505 = vpack.c.b16 %v1489, %v1489
        %v1506 = vpack.c.b16 %v1490, %v1490
        %v1507 = vpack.c.b16 %v1491, %v1491
        %v1508 = vpack.c.b16 %v1492, %v1492
        %v1509 = vpack.c.b16 %v1493, %v1493
        %v1510 = vpack.c.b16 %v1494, %v1494
        %v1511 = vpack.c.b16 %v1495, %v1495
        %v1512 = vpack.c.b16 %v1496, %v1496
        %v1513 = vpack.c.b16 %v1497, %v1497
        %v1514 = vpack.c.b16 %v1498, %v1498
        %v1515 = vpack.c.b16 %v1499, %v1499
        %v1516 = vpack.c.b16 %v1500, %v1500
        %v1517 = vpack.c.b16 %v1501, %v1501
        %1534 = vst [vmem:[#allocation2] sm:$0xf] %v1502
        %1535 = vst [vmem:[#allocation2 + $0x4] sm:$0xf] %v1503
        %1536 = vst [vmem:[#allocation2 + $0x8] sm:$0xf] %v1504
        %1537 = vst [vmem:[#allocation2 + $0xc] sm:$0xf] %v1505
        %1538 = vst [vmem:[#allocation2 + $0x10] sm:$0xf] %v1506
        %1539 = vst [vmem:[#allocation2 + $0x14] sm:$0xf] %v1507
        %1540 = vst [vmem:[#allocation2 + $0x18] sm:$0xf] %v1508
        %1541 = vst [vmem:[#allocation2 + $0x1c] sm:$0xf] %v1509
        %1542 = vst [vmem:[#allocation2 + $0x20] sm:$0xf] %v1510
        %1543 = vst [vmem:[#allocation2 + $0x24] sm:$0xf] %v1511
        %1544 = vst [vmem:[#allocation2 + $0x28] sm:$0xf] %v1512
        %1545 = vst [vmem:[#allocation2 + $0x2c] sm:$0xf] %v1513
        %1546 = vst [vmem:[#allocation2 + $0x30] sm:$0xf] %v1514
        %1547 = vst [vmem:[#allocation2 + $0x34] sm:$0xf] %v1515
        %1548 = vst [vmem:[#allocation2 + $0x38] sm:$0xf] %v1516
        %1549 = vst [vmem:[#allocation2 + $0x3c] sm:$0xf] %v1517
        %p1550 = scmp.eq.s32.totalorder %s25, 1
        // Predicated region
        $region85: #{gcn_forward_fused.1} parent=63 // pred_check
          %p1551 = pneg %p1550
        $region86: #{gcn_forward_fused.1} parent=63 // pred_check_branch
          %1553 = sbr.rel (%p1551) target = $region88
        $region87: #{gcn_forward_fused.1} parent=63 // pred_region
          %v1554 = vpack.c.bf16 %v557, %v557
          %1555 = vmatprep.subr.bf16.mxu0 0
          %1556 = vmatpush1.bf16.msra.mxu0 %v1477
          %1557 = vmatprep.subr.bf16.mxu0 0
          %1558 = vmatpush1.bf16.msra.mxu0 %v1476
          %1559 = vmatprep.subr.bf16.mxu0 0
          %1560 = vmatpush1.bf16.msra.mxu0 %v1475
          %1561 = vmatprep.subr.bf16.mxu0 0
          %1562 = vmatpush1.bf16.msra.mxu0 %v1474
          %1563 = vmatprep.subr.bf16.mxu0 0
          %1564 = vmatpush1.bf16.msra.mxu0 %v1473
          %1565 = vmatprep.subr.bf16.mxu0 0
          %1566 = vmatpush1.bf16.msra.mxu0 %v1472
          %1567 = vmatprep.subr.bf16.mxu0 0
          %1568 = vmatpush1.bf16.msra.mxu0 %v1471
          %1569 = vmatprep.subr.bf16.mxu0 0
          %1570 = vmatpush1.bf16.msra.mxu0 %v1470
          %1571 = vmatprep.subr.bf16.mxu0 0
          %1572 = vmatpush2.bf16.msra.mxu0 0
          %1573 = vmatprep.subr.bf16.mxu0 0
          %1574 = vmatpush2.bf16.msra.mxu0 0
          %1575 = vmatprep.subr.bf16.mxu0 0
          %1576 = vmatpush2.bf16.msra.mxu0 0
          %1577 = vmatprep.subr.bf16.mxu0 0
          %1578 = vmatpush2.bf16.msra.mxu0 0
          %1579 = vmatprep.subr.bf16.mxu0 0
          %1580 = vmatpush2.bf16.msra.mxu0 0
          %1581 = vmatprep.subr.bf16.mxu0 0
          %1582 = vmatpush2.bf16.msra.mxu0 0
          %1583 = vmatprep.subr.bf16.mxu0 0
          %1584 = vmatpush2.bf16.msra.mxu0 0
          %1585 = vmatprep.subr.bf16.mxu0 0
          %1586 = vmatpush2.bf16.msra.mxu0 0
          %1587 = vmatprep.mubr.bf16.mxu0 0
          %1588 = vmatmul.mubr.bf16.gmra.mxu0 %v1554
          %v1589 = vpop.f32.mrf.mxu0
          %v1590 = vadd.f32 0.0, %v1589
          %v1591 = vpop.f32.mrf.mxu0
          %v1592 = vpop.f32.mrf.mxu0
          %v1593 = vpop.f32.mrf.mxu0
          %1594 = vdwg.mxu0
          %v1595 = vpack.c.bf16 %v1590, %v1590
          %v1596 = vld [vmem:[#allocation9] sm:$0xf]
          %v1597 = vld [vmem:[#allocation9 + $0x4] sm:$0xf]
          %v1598 = vld [vmem:[#allocation9 + $0x8] sm:$0xf]
          %v1599 = vld [vmem:[#allocation9 + $0xc] sm:$0xf]
          %v1600 = vld [vmem:[#allocation9 + $0x10] sm:$0xf]
          %v1601 = vld [vmem:[#allocation9 + $0x14] sm:$0xf]
          %v1602 = vld [vmem:[#allocation9 + $0x18] sm:$0xf]
          %v1603 = vld [vmem:[#allocation9 + $0x1c] sm:$0xf]
          %v1604 = vld [vmem:[#allocation9 + $0x20] sm:$0xf]
          %v1605 = vld [vmem:[#allocation9 + $0x24] sm:$0xf]
          %v1606 = vld [vmem:[#allocation9 + $0x28] sm:$0xf]
          %v1607 = vld [vmem:[#allocation9 + $0x2c] sm:$0xf]
          %v1608 = vld [vmem:[#allocation9 + $0x30] sm:$0xf]
          %v1609 = vld [vmem:[#allocation9 + $0x34] sm:$0xf]
          %v1610 = vld [vmem:[#allocation9 + $0x38] sm:$0xf]
          %v1611 = vld [vmem:[#allocation9 + $0x3c] sm:$0xf]
          %v1612 = vld [vmem:[%s10] sm:$0x1]
          %v1614 = vlaneseq
          %v1615 = vshrl.u32 %v1614, 7
          %v1616 = vsub.s32 0, %v1615
          %v1617 = vrot.slane %v1612, %v1616
          %v1635 = vunpack.c.l.b16 %v1596
          %v1636 = vunpack.c.l.b16 %v1597
          %v1637 = vunpack.c.l.b16 %v1598
          %v1638 = vunpack.c.l.b16 %v1599
          %v1639 = vunpack.c.l.b16 %v1600
          %v1640 = vunpack.c.l.b16 %v1601
          %v1641 = vunpack.c.l.b16 %v1602
          %v1642 = vunpack.c.l.b16 %v1603
          %v1643 = vunpack.c.l.b16 %v1604
          %v1644 = vunpack.c.l.b16 %v1605
          %v1645 = vunpack.c.l.b16 %v1606
          %v1646 = vunpack.c.l.b16 %v1607
          %v1647 = vunpack.c.l.b16 %v1608
          %v1648 = vunpack.c.l.b16 %v1609
          %v1649 = vunpack.c.l.b16 %v1610
          %v1650 = vunpack.c.l.b16 %v1611
          %v1651 = vpack.c.b16 %v1636, %v1635
          %v1652 = vpack.c.b16 %v1638, %v1637
          %v1653 = vpack.c.b16 %v1640, %v1639
          %v1654 = vpack.c.b16 %v1642, %v1641
          %v1655 = vpack.c.b16 %v1644, %v1643
          %v1656 = vpack.c.b16 %v1646, %v1645
          %v1657 = vpack.c.b16 %v1648, %v1647
          %v1658 = vpack.c.b16 %v1650, %v1649
          %1667 = vmatprep.subr.bf16.mxu0 0
          %1668 = vmatpush1.bf16.msra.mxu0 %v1658
          %1669 = vmatprep.subr.bf16.mxu0 0
          %1670 = vmatpush1.bf16.msra.mxu0 %v1657
          %1671 = vmatprep.subr.bf16.mxu0 0
          %1672 = vmatpush1.bf16.msra.mxu0 %v1656
          %1673 = vmatprep.subr.bf16.mxu0 0
          %1674 = vmatpush1.bf16.msra.mxu0 %v1655
          %1675 = vmatprep.subr.bf16.mxu0 0
          %1676 = vmatpush1.bf16.msra.mxu0 %v1654
          %1677 = vmatprep.subr.bf16.mxu0 0
          %1678 = vmatpush1.bf16.msra.mxu0 %v1653
          %1679 = vmatprep.subr.bf16.mxu0 0
          %1680 = vmatpush1.bf16.msra.mxu0 %v1652
          %1681 = vmatprep.subr.bf16.mxu0 0
          %1682 = vmatpush1.bf16.msra.mxu0 %v1651
          %1683 = vmatprep.subr.bf16.mxu0 0
          %1684 = vmatpush2.bf16.msra.mxu0 0
          %1685 = vmatprep.subr.bf16.mxu0 0
          %1686 = vmatpush2.bf16.msra.mxu0 0
          %1687 = vmatprep.subr.bf16.mxu0 0
          %1688 = vmatpush2.bf16.msra.mxu0 0
          %1689 = vmatprep.subr.bf16.mxu0 0
          %1690 = vmatpush2.bf16.msra.mxu0 0
          %1691 = vmatprep.subr.bf16.mxu0 0
          %1692 = vmatpush2.bf16.msra.mxu0 0
          %1693 = vmatprep.subr.bf16.mxu0 0
          %1694 = vmatpush2.bf16.msra.mxu0 0
          %1695 = vmatprep.subr.bf16.mxu0 0
          %1696 = vmatpush2.bf16.msra.mxu0 0
          %1697 = vmatprep.subr.bf16.mxu0 0
          %1698 = vmatpush2.bf16.msra.mxu0 0
          %1699 = vmatprep.mubr.bf16.mxu0 0
          %1700 = vmatmul.mubr.bf16.gmra.mxu0 %v1595
          %v1701 = vpop.f32.mrf.mxu0
          %v1702 = vadd.f32 %v1617, %v1701
          %v1703 = vpop.f32.mrf.mxu0
          %v1704 = vpop.f32.mrf.mxu0
          %v1705 = vpop.f32.mrf.mxu0
          %1706 = vdwg.mxu0
          %1707 = vst [vmem:[#allocation10] sm:$0xff] %v1702
        $region88: #{gcn_forward_fused.1} parent=63 // pred_fallthru
          _
        // Predicated region
        $region89: #{gcn_forward_fused.1} parent=63 // pred_check
          %p1708 = pneg %p294
        $region90: #{gcn_forward_fused.1} parent=63 // pred_check_branch
          %1710 = sbr.rel (%p1708) target = $region92
        $region91: #{gcn_forward_fused.1} parent=63 // pred_region
          %s1712 = ssub.s32 128, 128
          %1713 = vsyncadd [#allocation5], %s1712
          %s1715 = sshll.u32 [#allocation10], 4
          %s1716 = int_to_ptr.vmem [resolvable:$true] %s1715
          %1718 = dma.vmem_to_hbm [thread:$0]  %s1716, 128, %s11, [#allocation5]
        $region92: #{gcn_forward_fused.1} parent=63 // pred_fallthru
          _
        // Predicated region
        $region93: #{gcn_forward_fused.1} parent=63 // pred_check
          %p1719 = pneg %p294
        $region94: #{gcn_forward_fused.1} parent=63 // pred_check_branch
          %1721 = sbr.rel (%p1719) target = $region96
        $region95: #{gcn_forward_fused.1} parent=63 // pred_region
          %1722 = dma.done [#allocation5], 128
        $region96: #{gcn_forward_fused.1} parent=63 // pred_fallthru
          _
      $region64: #{gcn_forward_fused.1} parent=5 // pred_fallthru
        _
      %p1723 = scmp.le.s32.totalorder 2, %s20
      // Predicated region
      $region97: #{gcn_forward_fused.1} parent=5 // pred_check
        %p1724 = pneg %p1723
      $region98: #{gcn_forward_fused.1} parent=5 // pred_check_branch
        %1726 = sbr.rel (%p1724) target = $region100
      $region99: #{gcn_forward_fused.1} parent=5 // pred_region
        %s1727 = ssub.s32 %s20, 2
      $region100: #{gcn_forward_fused.1} parent=5 // pred_fallthru
        _
    $region6: #{gcn_forward_fused.1} parent=1 // loop_footer
      %s24 = sadd.s32 1, %s20
    $region7: #{gcn_forward_fused.1} parent=1 // loop_footer_branch
      %19 = sbr.rel target = $region3
    $region8: #{gcn_forward_fused.1} parent=1 // loop_exit
      _
    %1728 = vsyncpa [#allocation4], 1
    %s1729 = scalar_lea.sflag [#allocation4], 1
    %1730 = vsyncpa %s1729, 1
    %1731 = vsyncpa [#allocation7], 1
    %1732 = vsyncpa [#allocation5], 1
    %s1733 = scalar_lea.sflag [#allocation5], 1
    %1734 = vsyncpa %s1733, 1

</llo_original>
